<compile_context>
chip_gen: v7x
topology: tpu7x:2x2x1
jax: 0.10.0
libtpu: 0.0.40
codegen_flags: <defaults>
</compile_context>

<pallas_src>
import jax
import jax.numpy as jnp
from jax.experimental import pallas as pl
from jax.experimental.pallas import tpu as pltpu


# ----------------------------------------------------------------------------
# Fused kernel: player MLP (home+away in one pass) + reductions + game MLP.
# One program handles TB batches.
# ----------------------------------------------------------------------------
def fused_kernel(hs_ref, as_ref, hgw_ref, agw_ref, hpt_ref, apt_ref,
                 w1_ref, b1_ref, w2_ref, b2_ref, w3_ref, b3_ref,
                 w4h_ref, w4a_ref, b4_ref, w5_ref, b5_ref, hfa_ref,
                 o_ref):
    tb, p, g, f = hs_ref.shape
    rows = tb * p * g

    # ---- Player MLP: stack home & away along the row axis -> 3 matmuls, 1 pass.
    # The (., P, G, F) -> (rows, F) collapse is layout-free when G is a multiple
    # of 8 (G=8 here); otherwise the compiler inserts a correct-but-slower relayout.
    x = jnp.concatenate([hs_ref[...], as_ref[...]], axis=0).reshape(2 * rows, f)
    h = jnp.maximum(
        jnp.dot(x, w1_ref[...], preferred_element_type=jnp.float32) + b1_ref[...], 0.0)
    h = jnp.maximum(
        jnp.dot(h, w2_ref[...], preferred_element_type=jnp.float32) + b2_ref[...], 0.0)
    h = jnp.maximum(
        jnp.dot(h, w3_ref[...], preferred_element_type=jnp.float32) + b3_ref[...], 0.0)
    h = h.reshape(2, tb, p, g, h.shape[-1])                  # (2, TB, P, G, 4)

    # NOTE: further lane-density (kron(I_G, W) block-diagonal packing) only if a
    # bundle dump shows VALU saturation -- not applied here.
    def side_rating(h_side, gw_ref, pt_ref):
        gw = gw_ref[...]                                     # (TB, P, G), lane-dense
        num = jnp.sum(h_side * gw[..., None], axis=2)        # (TB, P, 4)
        den = jnp.sum(gw, axis=-1) + 0.001                   # (TB, P)
        inv = pl.reciprocal(den, approx=True)                # EUP slot
        inv = inv * (2.0 - den * inv)                        # one Newton step -> ~f32 exact
        player_out = num * inv[..., None]                    # (TB, P, 4)
        return jnp.sum(player_out * pt_ref[...], axis=1)     # (TB, 4) team rating

    home_rating = side_rating(h[0], hgw_ref, hpt_ref)
    away_rating = side_rating(h[1], agw_ref, apt_ref)

    # ---- Game MLP. w4 pre-split in the wrapper avoids a lane-axis concat:
    # feat @ W4 == home_rating @ W4[:4] + away_rating @ W4[4:].
    z = jnp.maximum(
        jnp.dot(home_rating, w4h_ref[...], preferred_element_type=jnp.float32)
        + jnp.dot(away_rating, w4a_ref[...], preferred_element_type=jnp.float32)
        + b4_ref[...], 0.0)                                  # (TB, 16)
    y = jnp.dot(z, w5_ref[...], preferred_element_type=jnp.float32) + b5_ref[...]  # (TB, 1)
    # Lane-dense output: a single (1, TB)-wide row store per grid step.
    o_ref[...] = (y + hfa_ref[...]).T.reshape(1, 1, tb)


# ----------------------------------------------------------------------------
# Chip-aware sizing helpers.
# ----------------------------------------------------------------------------
def _tpu_config():
    """(physical VMEM bytes per core, #TensorCores per chip), with safe fallbacks."""
    phys_vmem = 64 << 20
    num_tc = 1
    try:
        phys_vmem = int(getattr(pltpu.get_tpu_info(), "vmem_capacity_bytes", phys_vmem))
    except Exception:
        pass
    try:
        kind = jax.devices()[0].device_kind.lower()
        if "v7" in kind:
            num_tc = 2          # only v7x has 2 TensorCores per chip
    except Exception:
        pass
    return phys_vmem, num_tc


def _pick_tb(B, P, G, vmem_budget_bytes, num_tc):
    # Conservative per-batch-element VMEM estimate (f32, lane-padded to 128):
    #   stats inputs : 2 sides x 2 pipeline buffers x (P*G rows) x 512 B
    #   temporaries  : ~5 intermediates over the merged 2*P*G rows x 512 B
    #   gw/pt/out    : ~64 KiB of small lane-padded blocks
    bytes_per_b = 14 * P * G * 512 + (64 << 10)
    cap = max(1, vmem_budget_bytes // bytes_per_b)
    if num_tc >= 2 and B > 1:
        # Keep at least one tile per TensorCore so "parallel" sharding has work.
        cap = min(cap, pl.cdiv(B, num_tc))
    return int(max(1, min(B, cap)))


def _pad_batch(x, b_pad):
    if x.shape[0] == b_pad:
        return x
    return jnp.pad(x, [(0, b_pad - x.shape[0])] + [(0, 0)] * (x.ndim - 1))


# ----------------------------------------------------------------------------
# Wrapper
# ----------------------------------------------------------------------------
@jax.jit
def game_rating_forward(params, home_stats, away_stats, home_gw, away_gw,
                        home_pt, away_pt):
    B, P, G, F = home_stats.shape
    phys_vmem, num_tc = _tpu_config()
    vmem_limit = int(min(phys_vmem, 128 << 20) * 3 // 4)   # ~96MiB v5e/v6e, ~48MiB v7x
    TB = _pick_tb(B, P, G, vmem_limit // 2, num_tc)        # 2x headroom vs. the limit
    n_tiles = int(pl.cdiv(B, TB))
    B_pad = n_tiles * TB

    hs = _pad_batch(home_stats, B_pad)
    as_ = _pad_batch(away_stats, B_pad)
    hgw = _pad_batch(home_gw, B_pad)                        # (B_pad, P, G) lane-dense
    agw = _pad_batch(away_gw, B_pad)
    hpt = _pad_batch(home_pt, B_pad).reshape(B_pad, P, 1)
    apt = _pad_batch(away_pt, B_pad).reshape(B_pad, P, 1)
    w4h = params["w4"][:4]                                  # home half (4, 16)
    w4a = params["w4"][4:]                                  # away half (4, 16)

    stat_spec = pl.BlockSpec((TB, P, G, F), lambda i: (i, 0, 0, 0))
    gw_spec = pl.BlockSpec((TB, P, G), lambda i: (i, 0, 0))
    pt_spec = pl.BlockSpec((TB, P, 1), lambda i: (i, 0, 0))

    def full(shape):
        return pl.BlockSpec(shape, lambda i, _n=len(shape): (0,) * _n)

    out = pl.pallas_call(
        fused_kernel,
        out_shape=jax.ShapeDtypeStruct((n_tiles, 1, TB), jnp.float32),
        grid=(n_tiles,),
        in_specs=[
            stat_spec, stat_spec, gw_spec, gw_spec, pt_spec, pt_spec,
            full((F, 16)), full((1, 16)),
            full((16, 12)), full((1, 12)),
            full((12, 4)), full((1, 4)),
            full((4, 16)), full((4, 16)), full((1, 16)),
            full((16, 1)), full((1, 1)),
            full((1, 1)),
        ],
        out_specs=pl.BlockSpec((1, 1, TB), lambda i: (i, 0, 0)),
        compiler_params=pltpu.CompilerParams(
            dimension_semantics=("parallel",),
            vmem_limit_bytes=vmem_limit),
    )(hs, as_, hgw, agw, hpt, apt,
      params["w1"], params["b1"], params["w2"], params["b2"],
      params["w3"], params["b3"], w4h, w4a, params["b4"],
      params["w5"], params["b5"], params["hfa"])

    return out.reshape(B_pad)[:B]


# ----------------------------------------------------------------------------
# Pure-JAX reference (mirrors the PyTorch forward) for correctness checking.
# ----------------------------------------------------------------------------
def reference_forward(params, hs, a_s, hgw, agw, hpt, apt):
    hp = jax.lax.Precision.HIGHEST
    mm = lambda a, b: jnp.dot(a, b, precision=hp)

    def player_model(stats, gw):
        h = jax.nn.relu(mm(stats, params["w1"]) + params["b1"][0])
        h = jax.nn.relu(mm(h, params["w2"]) + params["b2"][0])
        h = jax.nn.relu(mm(h, params["w3"]) + params["b3"][0])       # [B,P,G,4]
        wo = h * gw[..., None]
        return wo.sum(axis=2) / (gw.sum(axis=2)[..., None] + 0.001)  # [B,P,4]

    ho = player_model(hs, hgw)
    ao = player_model(a_s, agw)
    hr = (ho * hpt[..., None]).sum(axis=1)                            # [B,4]
    ar = (ao * apt[..., None]).sum(axis=1)                            # [B,4]
    feat = jnp.concatenate([hr, ar], axis=-1)                         # [B,8]
    h = jax.nn.relu(mm(feat, params["w4"]) + params["b4"][0])
    y = mm(h, params["w5"]) + params["b5"][0]                         # [B,1]
    return y[..., 0] + params["hfa"][0, 0]


def init_params(key):
    ks = jax.random.split(key, 10)
    u = lambda k, s: jax.random.uniform(k, s, jnp.float32, -0.3, 0.3)
    return {
        # player MLP: 20 -> 16 -> 12 -> 4 (weights stored as [in, out])
        "w1": u(ks[0], (20, 16)), "b1": u(ks[1], (1, 16)),
        "w2": u(ks[2], (16, 12)), "b2": u(ks[3], (1, 12)),
        "w3": u(ks[4], (12, 4)),  "b3": u(ks[5], (1, 4)),
        # game MLP: 8 -> 16 -> 1
        "w4": u(ks[6], (8, 16)),  "b4": u(ks[7], (1, 16)),
        "w5": u(ks[8], (16, 1)),  "b5": u(ks[9], (1, 1)),
        "hfa": jnp.full((1, 1), 4.5, jnp.float32),
    }


if __name__ == "__main__":
    B, P, G, F = 2, 8, 8, 20

    key = jax.random.PRNGKey(0)
    pkey, dkey = jax.random.split(key)
    params = init_params(pkey)

    d = jax.random.split(dkey, 6)
    home_team_stats = jax.random.normal(d[0], (B, P, G, F), jnp.float32)
    away_team_stats = jax.random.normal(d[1], (B, P, G, F), jnp.float32)
    home_game_weights = jax.random.uniform(d[2], (B, P, G), jnp.float32)
    away_game_weights = jax.random.uniform(d[3], (B, P, G), jnp.float32)
    home_play_times = jax.random.uniform(d[4], (B, P), jnp.float32)
    away_play_times = jax.random.uniform(d[5], (B, P), jnp.float32)

    out = game_rating_forward(params, home_team_stats, away_team_stats,
                              home_game_weights, away_game_weights,
                              home_play_times, away_play_times)
    out = jax.block_until_ready(out)

    ref = reference_forward(params, home_team_stats, away_team_stats,
                            home_game_weights, away_game_weights,
                            home_play_times, away_play_times)

    assert out.shape == (B,)
    assert jnp.allclose(out, ref, atol=1e-4, rtol=1e-4), (out, ref)
    print("KERNEL_OK")
</pallas_src>

<mosaic_0001>
module attributes {stable_mosaic.version = 11 : i64} {
  func.func @fused_kernel(%arg0: i32, %arg1: memref<2x8x8x20xf32, #tpu.memory_space<vmem>>, %arg2: memref<2x8x8x20xf32, #tpu.memory_space<vmem>>, %arg3: memref<2x8x8xf32, #tpu.memory_space<vmem>>, %arg4: memref<2x8x8xf32, #tpu.memory_space<vmem>>, %arg5: memref<2x8x1xf32, #tpu.memory_space<vmem>>, %arg6: memref<2x8x1xf32, #tpu.memory_space<vmem>>, %arg7: memref<20x16xf32, #tpu.memory_space<vmem>>, %arg8: memref<1x16xf32, #tpu.memory_space<vmem>>, %arg9: memref<16x12xf32, #tpu.memory_space<vmem>>, %arg10: memref<1x12xf32, #tpu.memory_space<vmem>>, %arg11: memref<12x4xf32, #tpu.memory_space<vmem>>, %arg12: memref<1x4xf32, #tpu.memory_space<vmem>>, %arg13: memref<4x16xf32, #tpu.memory_space<vmem>>, %arg14: memref<4x16xf32, #tpu.memory_space<vmem>>, %arg15: memref<1x16xf32, #tpu.memory_space<vmem>>, %arg16: memref<16x1xf32, #tpu.memory_space<vmem>>, %arg17: memref<1x1xf32, #tpu.memory_space<vmem>>, %arg18: memref<1x1xf32, #tpu.memory_space<vmem>>, %arg19: memref<1x1x2xf32, #tpu.memory_space<vmem>>) attributes {dimension_semantics = [#tpu.dimension_semantics<parallel>], iteration_bounds = array<i64: 1>, scalar_prefetch = 0 : i64, scratch_operands = 0 : i64, tpu.core_type = #tpu.core_type<tc>, window_params = [{transform_indices = @transform_0, window_bounds = array<i64: 2, 8, 8, 20>}, {transform_indices = @transform_1, window_bounds = array<i64: 2, 8, 8, 20>}, {transform_indices = @transform_2, window_bounds = array<i64: 2, 8, 8>}, {transform_indices = @transform_3, window_bounds = array<i64: 2, 8, 8>}, {transform_indices = @transform_4, window_bounds = array<i64: 2, 8, 1>}, {transform_indices = @transform_5, window_bounds = array<i64: 2, 8, 1>}, {pipeline_mode = #tpu.pipeline_mode<synchronous>, transform_indices = @transform_6, window_bounds = array<i64: 20, 16>}, {pipeline_mode = #tpu.pipeline_mode<synchronous>, transform_indices = @transform_7, window_bounds = array<i64: 1, 16>}, {pipeline_mode = #tpu.pipeline_mode<synchronous>, transform_indices = @transform_8, window_bounds = array<i64: 16, 12>}, {pipeline_mode = #tpu.pipeline_mode<synchronous>, transform_indices = @transform_9, window_bounds = array<i64: 1, 12>}, {pipeline_mode = #tpu.pipeline_mode<synchronous>, transform_indices = @transform_10, window_bounds = array<i64: 12, 4>}, {pipeline_mode = #tpu.pipeline_mode<synchronous>, transform_indices = @transform_11, window_bounds = array<i64: 1, 4>}, {pipeline_mode = #tpu.pipeline_mode<synchronous>, transform_indices = @transform_12, window_bounds = array<i64: 4, 16>}, {pipeline_mode = #tpu.pipeline_mode<synchronous>, transform_indices = @transform_13, window_bounds = array<i64: 4, 16>}, {pipeline_mode = #tpu.pipeline_mode<synchronous>, transform_indices = @transform_14, window_bounds = array<i64: 1, 16>}, {pipeline_mode = #tpu.pipeline_mode<synchronous>, transform_indices = @transform_15, window_bounds = array<i64: 16, 1>}, {pipeline_mode = #tpu.pipeline_mode<synchronous>, transform_indices = @transform_16, window_bounds = array<i64: 1, 1>}, {pipeline_mode = #tpu.pipeline_mode<synchronous>, transform_indices = @transform_17, window_bounds = array<i64: 1, 1>}, {transform_indices = @transform_18, window_bounds = array<i64: 1, 1, 2>}]} {
    %c0 = arith.constant 0 : index
    %c0_0 = arith.constant 0 : index
    %c0_1 = arith.constant 0 : index
    %c0_2 = arith.constant 0 : index
    %0 = vector.load %arg1[%c0, %c0_0, %c0_1, %c0_2] : memref<2x8x8x20xf32, #tpu.memory_space<vmem>>, vector<2x8x8x20xf32>
    %c0_3 = arith.constant 0 : index
    %c0_4 = arith.constant 0 : index
    %c0_5 = arith.constant 0 : index
    %c0_6 = arith.constant 0 : index
    %1 = vector.load %arg2[%c0_3, %c0_4, %c0_5, %c0_6] : memref<2x8x8x20xf32, #tpu.memory_space<vmem>>, vector<2x8x8x20xf32>
    %2 = tpu.concatenate %0, %1 in 0 : vector<2x8x8x20xf32>, vector<2x8x8x20xf32> -> vector<4x8x8x20xf32>
    %3 = vector.shape_cast %2 : vector<4x8x8x20xf32> to vector<256x20xf32>
    %c0_7 = arith.constant 0 : index
    %c0_8 = arith.constant 0 : index
    %4 = vector.load %arg7[%c0_7, %c0_8] : memref<20x16xf32, #tpu.memory_space<vmem>>, vector<20x16xf32>
    %cst = arith.constant dense<0.000000e+00> : vector<256x16xf32>
    %5 = tpu.matmul %3, %4, %cst {dimension_numbers = #tpu.dot_dimension_numbers<[1], [0], [0], [1], [0, 0, 1, 1], [], []>} : vector<256x20xf32>, vector<20x16xf32>, vector<256x16xf32> -> vector<256x16xf32>
    %c0_9 = arith.constant 0 : index
    %c0_10 = arith.constant 0 : index
    %6 = vector.load %arg8[%c0_9, %c0_10] : memref<1x16xf32, #tpu.memory_space<vmem>>, vector<1x16xf32>
    %7 = vector.broadcast %6 : vector<1x16xf32> to vector<256x16xf32>
    %8 = arith.addf %5, %7 : vector<256x16xf32>
    %cst_11 = arith.constant 0.000000e+00 : f32
    %9 = vector.broadcast %cst_11 : f32 to vector<256x16xf32>
    %10 = arith.maximumf %8, %9 : vector<256x16xf32>
    %c0_12 = arith.constant 0 : index
    %c0_13 = arith.constant 0 : index
    %11 = vector.load %arg9[%c0_12, %c0_13] : memref<16x12xf32, #tpu.memory_space<vmem>>, vector<16x12xf32>
    %cst_14 = arith.constant dense<0.000000e+00> : vector<256x12xf32>
    %12 = tpu.matmul %10, %11, %cst_14 {dimension_numbers = #tpu.dot_dimension_numbers<[1], [0], [0], [1], [0, 0, 1, 1], [], []>} : vector<256x16xf32>, vector<16x12xf32>, vector<256x12xf32> -> vector<256x12xf32>
    %c0_15 = arith.constant 0 : index
    %c0_16 = arith.constant 0 : index
    %13 = vector.load %arg10[%c0_15, %c0_16] : memref<1x12xf32, #tpu.memory_space<vmem>>, vector<1x12xf32>
    %14 = vector.broadcast %13 : vector<1x12xf32> to vector<256x12xf32>
    %15 = arith.addf %12, %14 : vector<256x12xf32>
    %cst_17 = arith.constant 0.000000e+00 : f32
    %16 = vector.broadcast %cst_17 : f32 to vector<256x12xf32>
    %17 = arith.maximumf %15, %16 : vector<256x12xf32>
    %c0_18 = arith.constant 0 : index
    %c0_19 = arith.constant 0 : index
    %18 = vector.load %arg11[%c0_18, %c0_19] : memref<12x4xf32, #tpu.memory_space<vmem>>, vector<12x4xf32>
    %cst_20 = arith.constant dense<0.000000e+00> : vector<256x4xf32>
    %19 = tpu.matmul %17, %18, %cst_20 {dimension_numbers = #tpu.dot_dimension_numbers<[1], [0], [0], [1], [0, 0, 1, 1], [], []>} : vector<256x12xf32>, vector<12x4xf32>, vector<256x4xf32> -> vector<256x4xf32>
    %c0_21 = arith.constant 0 : index
    %c0_22 = arith.constant 0 : index
    %20 = vector.load %arg12[%c0_21, %c0_22] : memref<1x4xf32, #tpu.memory_space<vmem>>, vector<1x4xf32>
    %21 = vector.broadcast %20 : vector<1x4xf32> to vector<256x4xf32>
    %22 = arith.addf %19, %21 : vector<256x4xf32>
    %cst_23 = arith.constant 0.000000e+00 : f32
    %23 = vector.broadcast %cst_23 : f32 to vector<256x4xf32>
    %24 = arith.maximumf %22, %23 : vector<256x4xf32>
    %25 = vector.shape_cast %24 : vector<256x4xf32> to vector<2x2x8x8x4xf32>
    %26 = vector.extract_strided_slice %25 {offsets = [0, 0, 0, 0, 0], sizes = [1, 2, 8, 8, 4], strides = [1, 1, 1, 1, 1]} : vector<2x2x8x8x4xf32> to vector<1x2x8x8x4xf32>
    %27 = vector.shape_cast %26 : vector<1x2x8x8x4xf32> to vector<2x8x8x4xf32>
    %c0_24 = arith.constant 0 : index
    %c0_25 = arith.constant 0 : index
    %c0_26 = arith.constant 0 : index
    %28 = vector.load %arg3[%c0_24, %c0_25, %c0_26] : memref<2x8x8xf32, #tpu.memory_space<vmem>>, vector<2x8x8xf32>
    %29 = vector.shape_cast %28 : vector<2x8x8xf32> to vector<2x8x8x1xf32>
    %30 = vector.broadcast %29 : vector<2x8x8x1xf32> to vector<2x8x8x4xf32>
    %31 = arith.mulf %27, %30 : vector<2x8x8x4xf32>
    %cst_27 = arith.constant dense<0.000000e+00> : vector<2x8x4xf32>
    %32 = vector.multi_reduction <add>, %31, %cst_27 [2] : vector<2x8x8x4xf32> to vector<2x8x4xf32>
    %cst_28 = arith.constant dense<0.000000e+00> : vector<2x8xf32>
    %33 = vector.multi_reduction <add>, %28, %cst_28 [2] : vector<2x8x8xf32> to vector<2x8xf32>
    %cst_29 = arith.constant 1.000000e-03 : f32
    %34 = vector.broadcast %cst_29 : f32 to vector<2x8xf32>
    %35 = arith.addf %33, %34 : vector<2x8xf32>
    %36 = tpu.reciprocal %35 {approx = true} : vector<2x8xf32> -> vector<2x8xf32>
    %37 = arith.mulf %35, %36 : vector<2x8xf32>
    %cst_30 = arith.constant 2.000000e+00 : f32
    %38 = vector.broadcast %cst_30 : f32 to vector<2x8xf32>
    %39 = arith.subf %38, %37 : vector<2x8xf32>
    %40 = arith.mulf %36, %39 : vector<2x8xf32>
    %41 = vector.shape_cast %40 : vector<2x8xf32> to vector<2x8x1xf32>
    %42 = vector.broadcast %41 : vector<2x8x1xf32> to vector<2x8x4xf32>
    %43 = arith.mulf %32, %42 : vector<2x8x4xf32>
    %c0_31 = arith.constant 0 : index
    %c0_32 = arith.constant 0 : index
    %c0_33 = arith.constant 0 : index
    %44 = vector.load %arg5[%c0_31, %c0_32, %c0_33] : memref<2x8x1xf32, #tpu.memory_space<vmem>>, vector<2x8x1xf32>
    %45 = vector.broadcast %44 : vector<2x8x1xf32> to vector<2x8x4xf32>
    %46 = arith.mulf %43, %45 : vector<2x8x4xf32>
    %cst_34 = arith.constant dense<0.000000e+00> : vector<2x4xf32>
    %47 = vector.multi_reduction <add>, %46, %cst_34 [1] : vector<2x8x4xf32> to vector<2x4xf32>
    %48 = vector.extract_strided_slice %25 {offsets = [1, 0, 0, 0, 0], sizes = [1, 2, 8, 8, 4], strides = [1, 1, 1, 1, 1]} : vector<2x2x8x8x4xf32> to vector<1x2x8x8x4xf32>
    %49 = vector.shape_cast %48 : vector<1x2x8x8x4xf32> to vector<2x8x8x4xf32>
    %c0_35 = arith.constant 0 : index
    %c0_36 = arith.constant 0 : index
    %c0_37 = arith.constant 0 : index
    %50 = vector.load %arg4[%c0_35, %c0_36, %c0_37] : memref<2x8x8xf32, #tpu.memory_space<vmem>>, vector<2x8x8xf32>
    %51 = vector.shape_cast %50 : vector<2x8x8xf32> to vector<2x8x8x1xf32>
    %52 = vector.broadcast %51 : vector<2x8x8x1xf32> to vector<2x8x8x4xf32>
    %53 = arith.mulf %49, %52 : vector<2x8x8x4xf32>
    %cst_38 = arith.constant dense<0.000000e+00> : vector<2x8x4xf32>
    %54 = vector.multi_reduction <add>, %53, %cst_38 [2] : vector<2x8x8x4xf32> to vector<2x8x4xf32>
    %cst_39 = arith.constant dense<0.000000e+00> : vector<2x8xf32>
    %55 = vector.multi_reduction <add>, %50, %cst_39 [2] : vector<2x8x8xf32> to vector<2x8xf32>
    %cst_40 = arith.constant 1.000000e-03 : f32
    %56 = vector.broadcast %cst_40 : f32 to vector<2x8xf32>
    %57 = arith.addf %55, %56 : vector<2x8xf32>
    %58 = tpu.reciprocal %57 {approx = true} : vector<2x8xf32> -> vector<2x8xf32>
    %59 = arith.mulf %57, %58 : vector<2x8xf32>
    %cst_41 = arith.constant 2.000000e+00 : f32
    %60 = vector.broadcast %cst_41 : f32 to vector<2x8xf32>
    %61 = arith.subf %60, %59 : vector<2x8xf32>
    %62 = arith.mulf %58, %61 : vector<2x8xf32>
    %63 = vector.shape_cast %62 : vector<2x8xf32> to vector<2x8x1xf32>
    %64 = vector.broadcast %63 : vector<2x8x1xf32> to vector<2x8x4xf32>
    %65 = arith.mulf %54, %64 : vector<2x8x4xf32>
    %c0_42 = arith.constant 0 : index
    %c0_43 = arith.constant 0 : index
    %c0_44 = arith.constant 0 : index
    %66 = vector.load %arg6[%c0_42, %c0_43, %c0_44] : memref<2x8x1xf32, #tpu.memory_space<vmem>>, vector<2x8x1xf32>
    %67 = vector.broadcast %66 : vector<2x8x1xf32> to vector<2x8x4xf32>
    %68 = arith.mulf %65, %67 : vector<2x8x4xf32>
    %cst_45 = arith.constant dense<0.000000e+00> : vector<2x4xf32>
    %69 = vector.multi_reduction <add>, %68, %cst_45 [1] : vector<2x8x4xf32> to vector<2x4xf32>
    %c0_46 = arith.constant 0 : index
    %c0_47 = arith.constant 0 : index
    %70 = vector.load %arg13[%c0_46, %c0_47] : memref<4x16xf32, #tpu.memory_space<vmem>>, vector<4x16xf32>
    %cst_48 = arith.constant dense<0.000000e+00> : vector<2x16xf32>
    %71 = tpu.matmul %47, %70, %cst_48 {dimension_numbers = #tpu.dot_dimension_numbers<[1], [0], [0], [1], [0, 0, 1, 1], [], []>} : vector<2x4xf32>, vector<4x16xf32>, vector<2x16xf32> -> vector<2x16xf32>
    %c0_49 = arith.constant 0 : index
    %c0_50 = arith.constant 0 : index
    %72 = vector.load %arg14[%c0_49, %c0_50] : memref<4x16xf32, #tpu.memory_space<vmem>>, vector<4x16xf32>
    %cst_51 = arith.constant dense<0.000000e+00> : vector<2x16xf32>
    %73 = tpu.matmul %69, %72, %cst_51 {dimension_numbers = #tpu.dot_dimension_numbers<[1], [0], [0], [1], [0, 0, 1, 1], [], []>} : vector<2x4xf32>, vector<4x16xf32>, vector<2x16xf32> -> vector<2x16xf32>
    %74 = arith.addf %71, %73 : vector<2x16xf32>
    %c0_52 = arith.constant 0 : index
    %c0_53 = arith.constant 0 : index
    %75 = vector.load %arg15[%c0_52, %c0_53] : memref<1x16xf32, #tpu.memory_space<vmem>>, vector<1x16xf32>
    %76 = vector.broadcast %75 : vector<1x16xf32> to vector<2x16xf32>
    %77 = arith.addf %74, %76 : vector<2x16xf32>
    %cst_54 = arith.constant 0.000000e+00 : f32
    %78 = vector.broadcast %cst_54 : f32 to vector<2x16xf32>
    %79 = arith.maximumf %77, %78 : vector<2x16xf32>
    %c0_55 = arith.constant 0 : index
    %c0_56 = arith.constant 0 : index
    %80 = vector.load %arg16[%c0_55, %c0_56] : memref<16x1xf32, #tpu.memory_space<vmem>>, vector<16x1xf32>
    %cst_57 = arith.constant dense<0.000000e+00> : vector<2x1xf32>
    %81 = tpu.matmul %79, %80, %cst_57 {dimension_numbers = #tpu.dot_dimension_numbers<[1], [0], [0], [1], [0, 0, 1, 1], [], []>} : vector<2x16xf32>, vector<16x1xf32>, vector<2x1xf32> -> vector<2x1xf32>
    %c0_58 = arith.constant 0 : index
    %c0_59 = arith.constant 0 : index
    %82 = vector.load %arg17[%c0_58, %c0_59] : memref<1x1xf32, #tpu.memory_space<vmem>>, vector<1x1xf32>
    %83 = vector.broadcast %82 : vector<1x1xf32> to vector<2x1xf32>
    %84 = arith.addf %81, %83 : vector<2x1xf32>
    %c0_60 = arith.constant 0 : index
    %c0_61 = arith.constant 0 : index
    %85 = vector.load %arg18[%c0_60, %c0_61] : memref<1x1xf32, #tpu.memory_space<vmem>>, vector<1x1xf32>
    %86 = vector.broadcast %85 : vector<1x1xf32> to vector<2x1xf32>
    %87 = arith.addf %84, %86 : vector<2x1xf32>
    %88 = tpu.transpose %87, [1, 0] : vector<2x1xf32> -> vector<1x2xf32>
    %89 = vector.shape_cast %88 : vector<1x2xf32> to vector<1x1x2xf32>
    %c0_62 = arith.constant 0 : index
    %c0_63 = arith.constant 0 : index
    %c0_64 = arith.constant 0 : index
    %90 = vector.load %arg19[%c0_62, %c0_63, %c0_64] : memref<1x1x2xf32, #tpu.memory_space<vmem>>, vector<1x1x2xf32>
    tpu.vector_store %arg19[%c0_62, %c0_63, %c0_64], %89 {strides = array<i32>} : memref<1x1x2xf32, #tpu.memory_space<vmem>>, vector<1x1x2xf32>,
    return
  }
  func.func @transform_0(%arg0: i32) -> (i32, i32, i32, i32) {
    %c0_i32 = arith.constant 0 : i32
    %c0_i32_0 = arith.constant 0 : i32
    %c0_i32_1 = arith.constant 0 : i32
    %c0_i32_2 = arith.constant 0 : i32
    return %arg0, %c0_i32, %c0_i32_0, %c0_i32_1 : i32, i32, i32, i32
  }
  func.func @transform_1(%arg0: i32) -> (i32, i32, i32, i32) {
    %c0_i32 = arith.constant 0 : i32
    %c0_i32_0 = arith.constant 0 : i32
    %c0_i32_1 = arith.constant 0 : i32
    %c0_i32_2 = arith.constant 0 : i32
    return %arg0, %c0_i32, %c0_i32_0, %c0_i32_1 : i32, i32, i32, i32
  }
  func.func @transform_2(%arg0: i32) -> (i32, i32, i32) {
    %c0_i32 = arith.constant 0 : i32
    %c0_i32_0 = arith.constant 0 : i32
    %c0_i32_1 = arith.constant 0 : i32
    return %arg0, %c0_i32, %c0_i32_0 : i32, i32, i32
  }
  func.func @transform_3(%arg0: i32) -> (i32, i32, i32) {
    %c0_i32 = arith.constant 0 : i32
    %c0_i32_0 = arith.constant 0 : i32
    %c0_i32_1 = arith.constant 0 : i32
    return %arg0, %c0_i32, %c0_i32_0 : i32, i32, i32
  }
  func.func @transform_4(%arg0: i32) -> (i32, i32, i32) {
    %c0_i32 = arith.constant 0 : i32
    %c0_i32_0 = arith.constant 0 : i32
    %c0_i32_1 = arith.constant 0 : i32
    return %arg0, %c0_i32, %c0_i32_0 : i32, i32, i32
  }
  func.func @transform_5(%arg0: i32) -> (i32, i32, i32) {
    %c0_i32 = arith.constant 0 : i32
    %c0_i32_0 = arith.constant 0 : i32
    %c0_i32_1 = arith.constant 0 : i32
    return %arg0, %c0_i32, %c0_i32_0 : i32, i32, i32
  }
  func.func @transform_6(%arg0: i32) -> (i32, i32) {
    %c0_i32 = arith.constant 0 : i32
    %c0_i32_0 = arith.constant 0 : i32
    %c0_i32_1 = arith.constant 0 : i32
    return %c0_i32, %c0_i32_0 : i32, i32
  }
  func.func @transform_7(%arg0: i32) -> (i32, i32) {
    %c0_i32 = arith.constant 0 : i32
    %c0_i32_0 = arith.constant 0 : i32
    %c0_i32_1 = arith.constant 0 : i32
    return %c0_i32, %c0_i32_0 : i32, i32
  }
  func.func @transform_8(%arg0: i32) -> (i32, i32) {
    %c0_i32 = arith.constant 0 : i32
    %c0_i32_0 = arith.constant 0 : i32
    %c0_i32_1 = arith.constant 0 : i32
    return %c0_i32, %c0_i32_0 : i32, i32
  }
  func.func @transform_9(%arg0: i32) -> (i32, i32) {
    %c0_i32 = arith.constant 0 : i32
    %c0_i32_0 = arith.constant 0 : i32
    %c0_i32_1 = arith.constant 0 : i32
    return %c0_i32, %c0_i32_0 : i32, i32
  }
  func.func @transform_10(%arg0: i32) -> (i32, i32) {
    %c0_i32 = arith.constant 0 : i32
    %c0_i32_0 = arith.constant 0 : i32
    %c0_i32_1 = arith.constant 0 : i32
    return %c0_i32, %c0_i32_0 : i32, i32
  }
  func.func @transform_11(%arg0: i32) -> (i32, i32) {
    %c0_i32 = arith.constant 0 : i32
    %c0_i32_0 = arith.constant 0 : i32
    %c0_i32_1 = arith.constant 0 : i32
    return %c0_i32, %c0_i32_0 : i32, i32
  }
  func.func @transform_12(%arg0: i32) -> (i32, i32) {
    %c0_i32 = arith.constant 0 : i32
    %c0_i32_0 = arith.constant 0 : i32
    %c0_i32_1 = arith.constant 0 : i32
    return %c0_i32, %c0_i32_0 : i32, i32
  }
  func.func @transform_13(%arg0: i32) -> (i32, i32) {
    %c0_i32 = arith.constant 0 : i32
    %c0_i32_0 = arith.constant 0 : i32
    %c0_i32_1 = arith.constant 0 : i32
    return %c0_i32, %c0_i32_0 : i32, i32
  }
  func.func @transform_14(%arg0: i32) -> (i32, i32) {
    %c0_i32 = arith.constant 0 : i32
    %c0_i32_0 = arith.constant 0 : i32
    %c0_i32_1 = arith.constant 0 : i32
    return %c0_i32, %c0_i32_0 : i32, i32
  }
  func.func @transform_15(%arg0: i32) -> (i32, i32) {
    %c0_i32 = arith.constant 0 : i32
    %c0_i32_0 = arith.constant 0 : i32
    %c0_i32_1 = arith.constant 0 : i32
    return %c0_i32, %c0_i32_0 : i32, i32
  }
  func.func @transform_16(%arg0: i32) -> (i32, i32) {
    %c0_i32 = arith.constant 0 : i32
    %c0_i32_0 = arith.constant 0 : i32
    %c0_i32_1 = arith.constant 0 : i32
    return %c0_i32, %c0_i32_0 : i32, i32
  }
  func.func @transform_17(%arg0: i32) -> (i32, i32) {
    %c0_i32 = arith.constant 0 : i32
    %c0_i32_0 = arith.constant 0 : i32
    %c0_i32_1 = arith.constant 0 : i32
    return %c0_i32, %c0_i32_0 : i32, i32
  }
  func.func @transform_18(%arg0: i32) -> (i32, i32, i32) {
    %c0_i32 = arith.constant 0 : i32
    %c0_i32_0 = arith.constant 0 : i32
    %c0_i32_1 = arith.constant 0 : i32
    return %arg0, %c0_i32, %c0_i32_0 : i32, i32, i32
  }
}

</mosaic_0001>

<llo_original>
// kernel: game_rating_forward.1
$region0: #{game_rating_forward.1}
  #allocation0 [shape = 'u32[]', space=smem, size = 0x4, offset = 0x4, fixed_abs, tag = 'smem constant byte address 0x4 - core index']
  #allocation1 [shape = 'u32[144,128]{1,0:T(1,128)}', space=vmem, size = 0x12000, scoped, tag = 'internal scratch']
  #allocation2 [shape = 'f32[1,1]{1,0:T(1,128)S(1)}', space=vmem, size = 0x200, scoped, tag = 'scoped memory for game_rating_forward.1']
  #allocation3 [shape = 'f32[1,1]{1,0:T(1,128)S(1)}', space=vmem, size = 0x200, scoped, tag = 'scoped memory for game_rating_forward.1']
  %s0 = inlined_call_operand.vmem [shape: f32[2,8,8,20], index: 0, kind: input, shape index: {}]
  %s1 = inlined_call_operand.hbm [shape: f32[2,8,8,20], index: 1, kind: input, shape index: {}]
  %s2 = inlined_call_operand.vmem [shape: f32[2,8,8], index: 2, kind: input, shape index: {}]
  %s3 = inlined_call_operand.vmem [shape: f32[2,8,8], index: 3, kind: input, shape index: {}]
  %s4 = inlined_call_operand.vmem [shape: f32[2,8,1], index: 4, kind: input, shape index: {}]
  %s5 = inlined_call_operand.vmem [shape: f32[2,8,1], index: 5, kind: input, shape index: {}]
  %s6 = inlined_call_operand.vmem [shape: f32[20,16], index: 6, kind: input, shape index: {}]
  %s7 = inlined_call_operand.vmem [shape: f32[1,16], index: 7, kind: input, shape index: {}]
  %s8 = inlined_call_operand.vmem [shape: f32[16,12], index: 8, kind: input, shape index: {}]
  %s9 = inlined_call_operand.vmem [shape: f32[1,12], index: 9, kind: input, shape index: {}]
  %s10 = inlined_call_operand.vmem [shape: f32[12,4], index: 10, kind: input, shape index: {}]
  %s11 = inlined_call_operand.vmem [shape: f32[1,4], index: 11, kind: input, shape index: {}]
  %s12 = inlined_call_operand.vmem [shape: f32[4,16], index: 12, kind: input, shape index: {}]
  %s13 = inlined_call_operand.vmem [shape: f32[4,16], index: 13, kind: input, shape index: {}]
  %s14 = inlined_call_operand.vmem [shape: f32[1,16], index: 14, kind: input, shape index: {}]
  %s15 = inlined_call_operand.vmem [shape: f32[16,1], index: 15, kind: input, shape index: {}]
  %s16 = inlined_call_operand.<no memory space> [shape: f32[1,1], index: 16, kind: input, shape index: {}]
  %s17 = inlined_call_operand.<no memory space> [shape: f32[1,1], index: 17, kind: input, shape index: {}]
  %s18 = inlined_call_operand.hbm [shape: f32[1,1,2], index: 18, kind: output, shape index: {}]
  %s19 = sld [smem:[#allocation0]]
  $region86: #{game_rating_forward.1} parent=0
    _
  %s21 = ssub.s32 1, %s19
  %s22 = scalar_select 0, %s21, %s19
  %v23 = vstv %s16
  %24 = vst [vmem:[#allocation2] sm:$0x1] %v23
  %v25 = vstv %s17
  %26 = vst [vmem:[#allocation3] sm:$0x1] %v25
  $region1: #{game_rating_forward.1} parent=0
    #allocation4 [shape = 'u8[65536]{0}', space=vmem, size = 0x10000, scoped, tag = 'input window, operand 1, single buffered']
    #allocation5 [shape = 's32[1]{0}', space=sflag, size = 0x4, scoped, tag = 'scoped memory for game_rating_forward.1']
    #allocation6 [shape = 's32[1]{0}', space=sflag, size = 0x4, scoped, tag = 'scoped memory for game_rating_forward.1']
    #allocation7 [shape = 'u8[512]{0}', space=vmem, size = 0x400, scoped, tag = 'output window, operand 0, single buffered']
    %27 = vsyncpa [#allocation5], 0
    %28 = vsyncpa [#allocation6], 0
    // Predicated region
    $region2: #{game_rating_forward.1} parent=1 // pred_check
      _
    $region3: #{game_rating_forward.1} parent=1 // pred_check_branch
      %30 = sbr.rel (0) target = $region5
    $region4: #{game_rating_forward.1} parent=1 // pred_region
      _
    $region5: #{game_rating_forward.1} parent=1 // pred_fallthru
      _
    // Predicated region
    $region6: #{game_rating_forward.1} parent=1 // pred_check
      _
    $region7: #{game_rating_forward.1} parent=1 // pred_check_branch
      %32 = sbr.rel (0) target = $region9
    $region8: #{game_rating_forward.1} parent=1 // pred_region
      %s34 = ssub.s32 2048, 2048
      %35 = vsyncadd [#allocation5], %s34
      %s36 = sshll.u32 [#allocation4], 4
      %s37 = int_to_ptr.vmem [resolvable:$true] %s36
      %42 = dma.hbm_to_vmem [thread:$0]  %s1, 2048, %s37, [#allocation5], 128, 128, 8
    $region9: #{game_rating_forward.1} parent=1 // pred_fallthru
      _
    // Predicated region
    $region10: #{game_rating_forward.1} parent=1 // pred_check
      _
    $region11: #{game_rating_forward.1} parent=1 // pred_check_branch
      %44 = sbr.rel (0) target = $region13
    $region12: #{game_rating_forward.1} parent=1 // pred_region
      _
    $region13: #{game_rating_forward.1} parent=1 // pred_fallthru
      _
    // Predicated region
    $region14: #{game_rating_forward.1} parent=1 // pred_check
      _
    $region15: #{game_rating_forward.1} parent=1 // pred_check_branch
      %46 = sbr.rel (0) target = $region17
    $region16: #{game_rating_forward.1} parent=1 // pred_region
      _
    $region17: #{game_rating_forward.1} parent=1 // pred_fallthru
      _
    // Predicated region
    $region18: #{game_rating_forward.1} parent=1 // pred_check
      _
    $region19: #{game_rating_forward.1} parent=1 // pred_check_branch
      %48 = sbr.rel (0) target = $region21
    $region20: #{game_rating_forward.1} parent=1 // pred_region
      _
    $region21: #{game_rating_forward.1} parent=1 // pred_fallthru
      _
    // Predicated region
    $region22: #{game_rating_forward.1} parent=1 // pred_check
      _
    $region23: #{game_rating_forward.1} parent=1 // pred_check_branch
      %50 = sbr.rel (0) target = $region25
    $region24: #{game_rating_forward.1} parent=1 // pred_region
      _
    $region25: #{game_rating_forward.1} parent=1 // pred_fallthru
      _
    // Predicated region
    $region26: #{game_rating_forward.1} parent=1 // pred_check
      _
    $region27: #{game_rating_forward.1} parent=1 // pred_check_branch
      %52 = sbr.rel (0) target = $region29
    $region28: #{game_rating_forward.1} parent=1 // pred_region
      _
    $region29: #{game_rating_forward.1} parent=1 // pred_fallthru
      _
    // Predicated region
    $region30: #{game_rating_forward.1} parent=1 // pred_check
      _
    $region31: #{game_rating_forward.1} parent=1 // pred_check_branch
      %54 = sbr.rel (0) target = $region33
    $region32: #{game_rating_forward.1} parent=1 // pred_region
      _
    $region33: #{game_rating_forward.1} parent=1 // pred_fallthru
      _
    // Predicated region
    $region34: #{game_rating_forward.1} parent=1 // pred_check
      _
    $region35: #{game_rating_forward.1} parent=1 // pred_check_branch
      %56 = sbr.rel (0) target = $region37
    $region36: #{game_rating_forward.1} parent=1 // pred_region
      _
    $region37: #{game_rating_forward.1} parent=1 // pred_fallthru
      _
    // Predicated region
    $region38: #{game_rating_forward.1} parent=1 // pred_check
      _
    $region39: #{game_rating_forward.1} parent=1 // pred_check_branch
      %58 = sbr.rel (0) target = $region41
    $region40: #{game_rating_forward.1} parent=1 // pred_region
      _
    $region41: #{game_rating_forward.1} parent=1 // pred_fallthru
      _
    // Predicated region
    $region42: #{game_rating_forward.1} parent=1 // pred_check
      _
    $region43: #{game_rating_forward.1} parent=1 // pred_check_branch
      %60 = sbr.rel (0) target = $region45
    $region44: #{game_rating_forward.1} parent=1 // pred_region
      _
    $region45: #{game_rating_forward.1} parent=1 // pred_fallthru
      _
    // Predicated region
    $region46: #{game_rating_forward.1} parent=1 // pred_check
      _
    $region47: #{game_rating_forward.1} parent=1 // pred_check_branch
      %62 = sbr.rel (0) target = $region49
    $region48: #{game_rating_forward.1} parent=1 // pred_region
      _
    $region49: #{game_rating_forward.1} parent=1 // pred_fallthru
      _
    // Predicated region
    $region50: #{game_rating_forward.1} parent=1 // pred_check
      _
    $region51: #{game_rating_forward.1} parent=1 // pred_check_branch
      %64 = sbr.rel (0) target = $region53
    $region52: #{game_rating_forward.1} parent=1 // pred_region
      _
    $region53: #{game_rating_forward.1} parent=1 // pred_fallthru
      _
    // Predicated region
    $region54: #{game_rating_forward.1} parent=1 // pred_check
      _
    $region55: #{game_rating_forward.1} parent=1 // pred_check_branch
      %66 = sbr.rel (0) target = $region57
    $region56: #{game_rating_forward.1} parent=1 // pred_region
      _
    $region57: #{game_rating_forward.1} parent=1 // pred_fallthru
      _
    // Predicated region
    $region58: #{game_rating_forward.1} parent=1 // pred_check
      _
    $region59: #{game_rating_forward.1} parent=1 // pred_check_branch
      %68 = sbr.rel (0) target = $region61
    $region60: #{game_rating_forward.1} parent=1 // pred_region
      _
    $region61: #{game_rating_forward.1} parent=1 // pred_fallthru
      _
    // Predicated region
    $region62: #{game_rating_forward.1} parent=1 // pred_check
      _
    $region63: #{game_rating_forward.1} parent=1 // pred_check_branch
      %70 = sbr.rel (0) target = $region65
    $region64: #{game_rating_forward.1} parent=1 // pred_region
      _
    $region65: #{game_rating_forward.1} parent=1 // pred_fallthru
      _
    // Predicated region
    $region66: #{game_rating_forward.1} parent=1 // pred_check
      _
    $region67: #{game_rating_forward.1} parent=1 // pred_check_branch
      %72 = sbr.rel (0) target = $region69
    $region68: #{game_rating_forward.1} parent=1 // pred_region
      _
    $region69: #{game_rating_forward.1} parent=1 // pred_fallthru
      _
    // Predicated region
    $region70: #{game_rating_forward.1} parent=1 // pred_check
      _
    $region71: #{game_rating_forward.1} parent=1 // pred_check_branch
      %74 = sbr.rel (0) target = $region73
    $region72: #{game_rating_forward.1} parent=1 // pred_region
      _
    $region73: #{game_rating_forward.1} parent=1 // pred_fallthru
      _
    // Predicated region
    $region74: #{game_rating_forward.1} parent=1 // pred_check
      _
    $region75: #{game_rating_forward.1} parent=1 // pred_check_branch
      %76 = sbr.rel (0) target = $region77
    $region76: #{game_rating_forward.1} parent=1 // pred_region
      %77 = dma.done [#allocation5], 2048
    $region77: #{game_rating_forward.1} parent=1 // pred_fallthru
      _
    %v78 = vld [vmem:[%s0] sm:$0xff]
    %v79 = vld [vmem:[%s0 + $0x8] sm:$0xff]
    %v80 = vld [vmem:[%s0 + $0x10] sm:$0xff]
    %v81 = vld [vmem:[%s0 + $0x18] sm:$0xff]
    %v82 = vld [vmem:[%s0 + $0x20] sm:$0xff]
    %v83 = vld [vmem:[%s0 + $0x28] sm:$0xff]
    %v84 = vld [vmem:[%s0 + $0x30] sm:$0xff]
    %v85 = vld [vmem:[%s0 + $0x38] sm:$0xff]
    %v86 = vld [vmem:[%s0 + $0x40] sm:$0xff]
    %v87 = vld [vmem:[%s0 + $0x48] sm:$0xff]
    %v88 = vld [vmem:[%s0 + $0x50] sm:$0xff]
    %v89 = vld [vmem:[%s0 + $0x58] sm:$0xff]
    %v90 = vld [vmem:[%s0 + $0x60] sm:$0xff]
    %v91 = vld [vmem:[%s0 + $0x68] sm:$0xff]
    %v92 = vld [vmem:[%s0 + $0x70] sm:$0xff]
    %v93 = vld [vmem:[%s0 + $0x78] sm:$0xff]
    %v94 = vld [vmem:[#allocation4] sm:$0xff]
    %v95 = vld [vmem:[#allocation4 + $0x8] sm:$0xff]
    %v96 = vld [vmem:[#allocation4 + $0x10] sm:$0xff]
    %v97 = vld [vmem:[#allocation4 + $0x18] sm:$0xff]
    %v98 = vld [vmem:[#allocation4 + $0x20] sm:$0xff]
    %v99 = vld [vmem:[#allocation4 + $0x28] sm:$0xff]
    %v100 = vld [vmem:[#allocation4 + $0x30] sm:$0xff]
    %v101 = vld [vmem:[#allocation4 + $0x38] sm:$0xff]
    %v102 = vld [vmem:[#allocation4 + $0x40] sm:$0xff]
    %v103 = vld [vmem:[#allocation4 + $0x48] sm:$0xff]
    %v104 = vld [vmem:[#allocation4 + $0x50] sm:$0xff]
    %v105 = vld [vmem:[#allocation4 + $0x58] sm:$0xff]
    %v106 = vld [vmem:[#allocation4 + $0x60] sm:$0xff]
    %v107 = vld [vmem:[#allocation4 + $0x68] sm:$0xff]
    %v108 = vld [vmem:[#allocation4 + $0x70] sm:$0xff]
    %v109 = vld [vmem:[#allocation4 + $0x78] sm:$0xff]
    %v110 = vld [vmem:[%s6] sm:$0xff]
    %v111 = vld [vmem:[%s6 + $0x8] sm:$0xff]
    %v112 = vld [vmem:[%s6 + $0x10] sm:$0xf]
    %v113 = vld [vmem:[%s7] sm:$0x1]
    %v115 = vlaneseq
    %v116 = vshrl.u32 %v115, 7
    %v117 = vsub.s32 0, %v116
    %v118 = vrot.slane %v113, %v117
    %vm120 = vcmask 162816
    %v122 = vsel %vm120, %v78, 0
    %v125 = vsel %vm120, %v79, 0
    %v128 = vsel %vm120, %v80, 0
    %v131 = vsel %vm120, %v81, 0
    %v134 = vsel %vm120, %v82, 0
    %v137 = vsel %vm120, %v83, 0
    %v140 = vsel %vm120, %v84, 0
    %v143 = vsel %vm120, %v85, 0
    %v146 = vsel %vm120, %v86, 0
    %v149 = vsel %vm120, %v87, 0
    %v152 = vsel %vm120, %v88, 0
    %v155 = vsel %vm120, %v89, 0
    %v158 = vsel %vm120, %v90, 0
    %v161 = vsel %vm120, %v91, 0
    %v164 = vsel %vm120, %v92, 0
    %v167 = vsel %vm120, %v93, 0
    %v170 = vsel %vm120, %v94, 0
    %v173 = vsel %vm120, %v95, 0
    %v176 = vsel %vm120, %v96, 0
    %v179 = vsel %vm120, %v97, 0
    %v182 = vsel %vm120, %v98, 0
    %v185 = vsel %vm120, %v99, 0
    %v188 = vsel %vm120, %v100, 0
    %v191 = vsel %vm120, %v101, 0
    %v194 = vsel %vm120, %v102, 0
    %v197 = vsel %vm120, %v103, 0
    %v200 = vsel %vm120, %v104, 0
    %v203 = vsel %vm120, %v105, 0
    %v206 = vsel %vm120, %v106, 0
    %v209 = vsel %vm120, %v107, 0
    %v212 = vsel %vm120, %v108, 0
    %v215 = vsel %vm120, %v109, 0
    %vm217 = vcmask 1043456
    %v219 = vsel %vm217, %v112, 0
    %221 = vmatprep.subr.mxu0 0.0
    %222 = vmatpush1.msra.mxu0 %v110
    %223 = vmatprep.subr.mxu0 0.0
    %224 = vmatpush1.msra.mxu0 %v111
    %225 = vmatprep.subr.mxu0 0.0
    %226 = vmatpush1.msra.mxu0 %v219
    %227 = vmatprep.subr.mxu0 0.0
    %228 = vmatpush1.msra.mxu0 0.0
    %229 = vmatprep.subr.mxu0 0.0
    %230 = vmatpush1.msra.mxu0 0.0
    %231 = vmatprep.subr.mxu0 0.0
    %232 = vmatpush1.msra.mxu0 0.0
    %233 = vmatprep.subr.mxu0 0.0
    %234 = vmatpush1.msra.mxu0 0.0
    %235 = vmatprep.subr.mxu0 0.0
    %236 = vmatpush1.msra.mxu0 0.0
    %237 = vmatprep.subr.mxu0 0.0
    %238 = vmatpush1.msra.mxu0 0.0
    %239 = vmatprep.subr.mxu0 0.0
    %240 = vmatpush1.msra.mxu0 0.0
    %241 = vmatprep.subr.mxu0 0.0
    %242 = vmatpush1.msra.mxu0 0.0
    %243 = vmatprep.subr.mxu0 0.0
    %244 = vmatpush1.msra.mxu0 0.0
    %245 = vmatprep.subr.mxu0 0.0
    %246 = vmatpush1.msra.mxu0 0.0
    %247 = vmatprep.subr.mxu0 0.0
    %248 = vmatpush1.msra.mxu0 0.0
    %249 = vmatprep.subr.mxu0 0.0
    %250 = vmatpush1.msra.mxu0 0.0
    %251 = vmatprep.subr.mxu0 0.0
    %252 = vmatpush1.msra.mxu0 0.0
    %253 = vmatprep.subr.mxu0 0.0
    %254 = vmatpush1.msra.mxu0 0.0
    %255 = vmatprep.subr.mxu0 0.0
    %256 = vmatpush1.msra.mxu0 0.0
    %257 = vmatprep.subr.mxu0 0.0
    %258 = vmatpush1.msra.mxu0 0.0
    %259 = vmatprep.subr.mxu0 0.0
    %260 = vmatpush1.msra.mxu0 0.0
    %261 = vmatprep.subr.mxu0 0.0
    %262 = vmatpush1.msra.mxu0 0.0
    %263 = vmatprep.subr.mxu0 0.0
    %264 = vmatpush1.msra.mxu0 0.0
    %265 = vmatprep.subr.mxu0 0.0
    %266 = vmatpush1.msra.mxu0 0.0
    %267 = vmatprep.subr.mxu0 0.0
    %268 = vmatpush1.msra.mxu0 0.0
    %269 = vmatprep.subr.mxu0 0.0
    %270 = vmatpush1.msra.mxu0 0.0
    %271 = vmatprep.subr.mxu0 0.0
    %272 = vmatpush1.msra.mxu0 0.0
    %273 = vmatprep.subr.mxu0 0.0
    %274 = vmatpush1.msra.mxu0 0.0
    %275 = vmatprep.subr.mxu0 0.0
    %276 = vmatpush1.msra.mxu0 0.0
    %277 = vmatprep.subr.mxu0 0.0
    %278 = vmatpush1.msra.mxu0 0.0
    %279 = vmatprep.subr.mxu0 0.0
    %280 = vmatpush1.msra.mxu0 0.0
    %281 = vmatprep.subr.mxu0 0.0
    %282 = vmatpush1.msra.mxu0 0.0
    %283 = vmatprep.subr.mxu0 0.0
    %284 = vmatpush1.msra.mxu0 0.0
    %285 = vmatprep.mubr.f32.mxu0 0.0
    %286 = vmatmul.mubr.f32.gmra.mrb[0].mxu0 %v122
    %v287 = vpop.f32.mrb[0].mxu0
    %v288 = vadd.f32 %v118, %v287
    %v289 = vpop.f32.mrb[0].mxu0
    %290 = vmatprep.mubr.f32.mxu0 0.0
    %291 = vmatmul.mubr.f32.gmra.mrb[0].mxu0 %v125
    %v292 = vpop.f32.mrb[0].mxu0
    %v293 = vadd.f32 %v118, %v292
    %v294 = vpop.f32.mrb[0].mxu0
    %295 = vmatprep.mubr.f32.mxu0 0.0
    %296 = vmatmul.mubr.f32.gmra.mrb[0].mxu0 %v128
    %v297 = vpop.f32.mrb[0].mxu0
    %v298 = vadd.f32 %v118, %v297
    %v299 = vpop.f32.mrb[0].mxu0
    %300 = vmatprep.mubr.f32.mxu0 0.0
    %301 = vmatmul.mubr.f32.gmra.mrb[0].mxu0 %v131
    %v302 = vpop.f32.mrb[0].mxu0
    %v303 = vadd.f32 %v118, %v302
    %v304 = vpop.f32.mrb[0].mxu0
    %305 = vmatprep.mubr.f32.mxu0 0.0
    %306 = vmatmul.mubr.f32.gmra.mrb[0].mxu0 %v134
    %v307 = vpop.f32.mrb[0].mxu0
    %v308 = vadd.f32 %v118, %v307
    %v309 = vpop.f32.mrb[0].mxu0
    %310 = vmatprep.mubr.f32.mxu0 0.0
    %311 = vmatmul.mubr.f32.gmra.mrb[0].mxu0 %v137
    %v312 = vpop.f32.mrb[0].mxu0
    %v313 = vadd.f32 %v118, %v312
    %v314 = vpop.f32.mrb[0].mxu0
    %315 = vmatprep.mubr.f32.mxu0 0.0
    %316 = vmatmul.mubr.f32.gmra.mrb[0].mxu0 %v140
    %v317 = vpop.f32.mrb[0].mxu0
    %v318 = vadd.f32 %v118, %v317
    %v319 = vpop.f32.mrb[0].mxu0
    %320 = vmatprep.mubr.f32.mxu0 0.0
    %321 = vmatmul.mubr.f32.gmra.mrb[0].mxu0 %v143
    %v322 = vpop.f32.mrb[0].mxu0
    %v323 = vadd.f32 %v118, %v322
    %v324 = vpop.f32.mrb[0].mxu0
    %325 = vmatprep.mubr.f32.mxu0 0.0
    %326 = vmatmul.mubr.f32.gmra.mrb[0].mxu0 %v146
    %v327 = vpop.f32.mrb[0].mxu0
    %v328 = vadd.f32 %v118, %v327
    %v329 = vpop.f32.mrb[0].mxu0
    %330 = vmatprep.mubr.f32.mxu0 0.0
    %331 = vmatmul.mubr.f32.gmra.mrb[0].mxu0 %v149
    %v332 = vpop.f32.mrb[0].mxu0
    %v333 = vadd.f32 %v118, %v332
    %v334 = vpop.f32.mrb[0].mxu0
    %335 = vmatprep.mubr.f32.mxu0 0.0
    %336 = vmatmul.mubr.f32.gmra.mrb[0].mxu0 %v152
    %v337 = vpop.f32.mrb[0].mxu0
    %v338 = vadd.f32 %v118, %v337
    %v339 = vpop.f32.mrb[0].mxu0
    %340 = vmatprep.mubr.f32.mxu0 0.0
    %341 = vmatmul.mubr.f32.gmra.mrb[0].mxu0 %v155
    %v342 = vpop.f32.mrb[0].mxu0
    %v343 = vadd.f32 %v118, %v342
    %v344 = vpop.f32.mrb[0].mxu0
    %345 = vmatprep.mubr.f32.mxu0 0.0
    %346 = vmatmul.mubr.f32.gmra.mrb[0].mxu0 %v158
    %v347 = vpop.f32.mrb[0].mxu0
    %v348 = vadd.f32 %v118, %v347
    %v349 = vpop.f32.mrb[0].mxu0
    %350 = vmatprep.mubr.f32.mxu0 0.0
    %351 = vmatmul.mubr.f32.gmra.mrb[0].mxu0 %v161
    %v352 = vpop.f32.mrb[0].mxu0
    %v353 = vadd.f32 %v118, %v352
    %v354 = vpop.f32.mrb[0].mxu0
    %355 = vmatprep.mubr.f32.mxu0 0.0
    %356 = vmatmul.mubr.f32.gmra.mrb[0].mxu0 %v164
    %v357 = vpop.f32.mrb[0].mxu0
    %v358 = vadd.f32 %v118, %v357
    %v359 = vpop.f32.mrb[0].mxu0
    %360 = vmatprep.mubr.f32.mxu0 0.0
    %361 = vmatmul.mubr.f32.gmra.mrb[0].mxu0 %v167
    %v362 = vpop.f32.mrb[0].mxu0
    %v363 = vadd.f32 %v118, %v362
    %v364 = vpop.f32.mrb[0].mxu0
    %365 = vmatprep.mubr.f32.mxu0 0.0
    %366 = vmatmul.mubr.f32.gmra.mrb[0].mxu0 %v170
    %v367 = vpop.f32.mrb[0].mxu0
    %v368 = vadd.f32 %v118, %v367
    %v369 = vpop.f32.mrb[0].mxu0
    %370 = vmatprep.mubr.f32.mxu0 0.0
    %371 = vmatmul.mubr.f32.gmra.mrb[0].mxu0 %v173
    %v372 = vpop.f32.mrb[0].mxu0
    %v373 = vadd.f32 %v118, %v372
    %v374 = vpop.f32.mrb[0].mxu0
    %375 = vmatprep.mubr.f32.mxu0 0.0
    %376 = vmatmul.mubr.f32.gmra.mrb[0].mxu0 %v176
    %v377 = vpop.f32.mrb[0].mxu0
    %v378 = vadd.f32 %v118, %v377
    %v379 = vpop.f32.mrb[0].mxu0
    %380 = vmatprep.mubr.f32.mxu0 0.0
    %381 = vmatmul.mubr.f32.gmra.mrb[0].mxu0 %v179
    %v382 = vpop.f32.mrb[0].mxu0
    %v383 = vadd.f32 %v118, %v382
    %v384 = vpop.f32.mrb[0].mxu0
    %385 = vmatprep.mubr.f32.mxu0 0.0
    %386 = vmatmul.mubr.f32.gmra.mrb[0].mxu0 %v182
    %v387 = vpop.f32.mrb[0].mxu0
    %v388 = vadd.f32 %v118, %v387
    %v389 = vpop.f32.mrb[0].mxu0
    %390 = vmatprep.mubr.f32.mxu0 0.0
    %391 = vmatmul.mubr.f32.gmra.mrb[0].mxu0 %v185
    %v392 = vpop.f32.mrb[0].mxu0
    %v393 = vadd.f32 %v118, %v392
    %v394 = vpop.f32.mrb[0].mxu0
    %395 = vmatprep.mubr.f32.mxu0 0.0
    %396 = vmatmul.mubr.f32.gmra.mrb[0].mxu0 %v188
    %v397 = vpop.f32.mrb[0].mxu0
    %v398 = vadd.f32 %v118, %v397
    %v399 = vpop.f32.mrb[0].mxu0
    %400 = vmatprep.mubr.f32.mxu0 0.0
    %401 = vmatmul.mubr.f32.gmra.mrb[0].mxu0 %v191
    %v402 = vpop.f32.mrb[0].mxu0
    %v403 = vadd.f32 %v118, %v402
    %v404 = vpop.f32.mrb[0].mxu0
    %405 = vmatprep.mubr.f32.mxu0 0.0
    %406 = vmatmul.mubr.f32.gmra.mrb[0].mxu0 %v194
    %v407 = vpop.f32.mrb[0].mxu0
    %v408 = vadd.f32 %v118, %v407
    %v409 = vpop.f32.mrb[0].mxu0
    %410 = vmatprep.mubr.f32.mxu0 0.0
    %411 = vmatmul.mubr.f32.gmra.mrb[0].mxu0 %v197
    %v412 = vpop.f32.mrb[0].mxu0
    %v413 = vadd.f32 %v118, %v412
    %v414 = vpop.f32.mrb[0].mxu0
    %415 = vmatprep.mubr.f32.mxu0 0.0
    %416 = vmatmul.mubr.f32.gmra.mrb[0].mxu0 %v200
    %v417 = vpop.f32.mrb[0].mxu0
    %v418 = vadd.f32 %v118, %v417
    %v419 = vpop.f32.mrb[0].mxu0
    %420 = vmatprep.mubr.f32.mxu0 0.0
    %421 = vmatmul.mubr.f32.gmra.mrb[0].mxu0 %v203
    %v422 = vpop.f32.mrb[0].mxu0
    %v423 = vadd.f32 %v118, %v422
    %v424 = vpop.f32.mrb[0].mxu0
    %425 = vmatprep.mubr.f32.mxu0 0.0
    %426 = vmatmul.mubr.f32.gmra.mrb[0].mxu0 %v206
    %v427 = vpop.f32.mrb[0].mxu0
    %v428 = vadd.f32 %v118, %v427
    %v429 = vpop.f32.mrb[0].mxu0
    %430 = vmatprep.mubr.f32.mxu0 0.0
    %431 = vmatmul.mubr.f32.gmra.mrb[0].mxu0 %v209
    %v432 = vpop.f32.mrb[0].mxu0
    %v433 = vadd.f32 %v118, %v432
    %v434 = vpop.f32.mrb[0].mxu0
    %435 = vmatprep.mubr.f32.mxu0 0.0
    %436 = vmatmul.mubr.f32.gmra.mrb[0].mxu0 %v212
    %v437 = vpop.f32.mrb[0].mxu0
    %v438 = vadd.f32 %v118, %v437
    %v439 = vpop.f32.mrb[0].mxu0
    %440 = vmatprep.mubr.f32.mxu0 0.0
    %441 = vmatmul.mubr.f32.gmra.mrb[0].mxu0 %v215
    %v442 = vpop.f32.mrb[0].mxu0
    %v443 = vadd.f32 %v118, %v442
    %v444 = vpop.f32.mrb[0].mxu0
    %445 = vdwg.mxu0
    %v446 = vmax.f32 %v288, 0.0
    %v447 = vmax.f32 %v293, 0.0
    %v448 = vmax.f32 %v298, 0.0
    %v449 = vmax.f32 %v303, 0.0
    %v450 = vmax.f32 %v308, 0.0
    %v451 = vmax.f32 %v313, 0.0
    %v452 = vmax.f32 %v318, 0.0
    %v453 = vmax.f32 %v323, 0.0
    %v454 = vmax.f32 %v328, 0.0
    %v455 = vmax.f32 %v333, 0.0
    %v456 = vmax.f32 %v338, 0.0
    %v457 = vmax.f32 %v343, 0.0
    %v458 = vmax.f32 %v348, 0.0
    %v459 = vmax.f32 %v353, 0.0
    %v460 = vmax.f32 %v358, 0.0
    %v461 = vmax.f32 %v363, 0.0
    %v462 = vmax.f32 %v368, 0.0
    %v463 = vmax.f32 %v373, 0.0
    %v464 = vmax.f32 %v378, 0.0
    %v465 = vmax.f32 %v383, 0.0
    %v466 = vmax.f32 %v388, 0.0
    %v467 = vmax.f32 %v393, 0.0
    %v468 = vmax.f32 %v398, 0.0
    %v469 = vmax.f32 %v403, 0.0
    %v470 = vmax.f32 %v408, 0.0
    %v471 = vmax.f32 %v413, 0.0
    %v472 = vmax.f32 %v418, 0.0
    %v473 = vmax.f32 %v423, 0.0
    %v474 = vmax.f32 %v428, 0.0
    %v475 = vmax.f32 %v433, 0.0
    %v476 = vmax.f32 %v438, 0.0
    %v477 = vmax.f32 %v443, 0.0
    %v478 = vld [vmem:[%s8] sm:$0xff]
    %v479 = vld [vmem:[%s8 + $0x8] sm:$0xff]
    %v480 = vld [vmem:[%s9] sm:$0x1]
    %v482 = vlaneseq
    %v483 = vshrl.u32 %v482, 7
    %v484 = vsub.s32 0, %v483
    %v485 = vrot.slane %v480, %v484
    %vm487 = vcmask 130048
    %v489 = vsel %vm487, %v446, 0
    %v492 = vsel %vm487, %v447, 0
    %v495 = vsel %vm487, %v448, 0
    %v498 = vsel %vm487, %v449, 0
    %v501 = vsel %vm487, %v450, 0
    %v504 = vsel %vm487, %v451, 0
    %v507 = vsel %vm487, %v452, 0
    %v510 = vsel %vm487, %v453, 0
    %v513 = vsel %vm487, %v454, 0
    %v516 = vsel %vm487, %v455, 0
    %v519 = vsel %vm487, %v456, 0
    %v522 = vsel %vm487, %v457, 0
    %v525 = vsel %vm487, %v458, 0
    %v528 = vsel %vm487, %v459, 0
    %v531 = vsel %vm487, %v460, 0
    %v534 = vsel %vm487, %v461, 0
    %v537 = vsel %vm487, %v462, 0
    %v540 = vsel %vm487, %v463, 0
    %v543 = vsel %vm487, %v464, 0
    %v546 = vsel %vm487, %v465, 0
    %v549 = vsel %vm487, %v466, 0
    %v552 = vsel %vm487, %v467, 0
    %v555 = vsel %vm487, %v468, 0
    %v558 = vsel %vm487, %v469, 0
    %v561 = vsel %vm487, %v470, 0
    %v564 = vsel %vm487, %v471, 0
    %v567 = vsel %vm487, %v472, 0
    %v570 = vsel %vm487, %v473, 0
    %v573 = vsel %vm487, %v474, 0
    %v576 = vsel %vm487, %v475, 0
    %v579 = vsel %vm487, %v476, 0
    %v582 = vsel %vm487, %v477, 0
    %584 = vmatprep.subr.mxu0 0.0
    %585 = vmatpush1.msra.mxu0 %v478
    %586 = vmatprep.subr.mxu0 0.0
    %587 = vmatpush1.msra.mxu0 %v479
    %588 = vmatprep.subr.mxu0 0.0
    %589 = vmatpush1.msra.mxu0 0.0
    %590 = vmatprep.subr.mxu0 0.0
    %591 = vmatpush1.msra.mxu0 0.0
    %592 = vmatprep.subr.mxu0 0.0
    %593 = vmatpush1.msra.mxu0 0.0
    %594 = vmatprep.subr.mxu0 0.0
    %595 = vmatpush1.msra.mxu0 0.0
    %596 = vmatprep.subr.mxu0 0.0
    %597 = vmatpush1.msra.mxu0 0.0
    %598 = vmatprep.subr.mxu0 0.0
    %599 = vmatpush1.msra.mxu0 0.0
    %600 = vmatprep.subr.mxu0 0.0
    %601 = vmatpush1.msra.mxu0 0.0
    %602 = vmatprep.subr.mxu0 0.0
    %603 = vmatpush1.msra.mxu0 0.0
    %604 = vmatprep.subr.mxu0 0.0
    %605 = vmatpush1.msra.mxu0 0.0
    %606 = vmatprep.subr.mxu0 0.0
    %607 = vmatpush1.msra.mxu0 0.0
    %608 = vmatprep.subr.mxu0 0.0
    %609 = vmatpush1.msra.mxu0 0.0
    %610 = vmatprep.subr.mxu0 0.0
    %611 = vmatpush1.msra.mxu0 0.0
    %612 = vmatprep.subr.mxu0 0.0
    %613 = vmatpush1.msra.mxu0 0.0
    %614 = vmatprep.subr.mxu0 0.0
    %615 = vmatpush1.msra.mxu0 0.0
    %616 = vmatprep.subr.mxu0 0.0
    %617 = vmatpush1.msra.mxu0 0.0
    %618 = vmatprep.subr.mxu0 0.0
    %619 = vmatpush1.msra.mxu0 0.0
    %620 = vmatprep.subr.mxu0 0.0
    %621 = vmatpush1.msra.mxu0 0.0
    %622 = vmatprep.subr.mxu0 0.0
    %623 = vmatpush1.msra.mxu0 0.0
    %624 = vmatprep.subr.mxu0 0.0
    %625 = vmatpush1.msra.mxu0 0.0
    %626 = vmatprep.subr.mxu0 0.0
    %627 = vmatpush1.msra.mxu0 0.0
    %628 = vmatprep.subr.mxu0 0.0
    %629 = vmatpush1.msra.mxu0 0.0
    %630 = vmatprep.subr.mxu0 0.0
    %631 = vmatpush1.msra.mxu0 0.0
    %632 = vmatprep.subr.mxu0 0.0
    %633 = vmatpush1.msra.mxu0 0.0
    %634 = vmatprep.subr.mxu0 0.0
    %635 = vmatpush1.msra.mxu0 0.0
    %636 = vmatprep.subr.mxu0 0.0
    %637 = vmatpush1.msra.mxu0 0.0
    %638 = vmatprep.subr.mxu0 0.0
    %639 = vmatpush1.msra.mxu0 0.0
    %640 = vmatprep.subr.mxu0 0.0
    %641 = vmatpush1.msra.mxu0 0.0
    %642 = vmatprep.subr.mxu0 0.0
    %643 = vmatpush1.msra.mxu0 0.0
    %644 = vmatprep.subr.mxu0 0.0
    %645 = vmatpush1.msra.mxu0 0.0
    %646 = vmatprep.subr.mxu0 0.0
    %647 = vmatpush1.msra.mxu0 0.0
    %648 = vmatprep.mubr.f32.mxu0 0.0
    %649 = vmatmul.mubr.f32.gmra.mrb[0].mxu0 %v489
    %v650 = vpop.f32.mrb[0].mxu0
    %v651 = vadd.f32 %v485, %v650
    %v652 = vpop.f32.mrb[0].mxu0
    %653 = vmatprep.mubr.f32.mxu0 0.0
    %654 = vmatmul.mubr.f32.gmra.mrb[0].mxu0 %v492
    %v655 = vpop.f32.mrb[0].mxu0
    %v656 = vadd.f32 %v485, %v655
    %v657 = vpop.f32.mrb[0].mxu0
    %658 = vmatprep.mubr.f32.mxu0 0.0
    %659 = vmatmul.mubr.f32.gmra.mrb[0].mxu0 %v495
    %v660 = vpop.f32.mrb[0].mxu0
    %v661 = vadd.f32 %v485, %v660
    %v662 = vpop.f32.mrb[0].mxu0
    %663 = vmatprep.mubr.f32.mxu0 0.0
    %664 = vmatmul.mubr.f32.gmra.mrb[0].mxu0 %v498
    %v665 = vpop.f32.mrb[0].mxu0
    %v666 = vadd.f32 %v485, %v665
    %v667 = vpop.f32.mrb[0].mxu0
    %668 = vmatprep.mubr.f32.mxu0 0.0
    %669 = vmatmul.mubr.f32.gmra.mrb[0].mxu0 %v501
    %v670 = vpop.f32.mrb[0].mxu0
    %v671 = vadd.f32 %v485, %v670
    %v672 = vpop.f32.mrb[0].mxu0
    %673 = vmatprep.mubr.f32.mxu0 0.0
    %674 = vmatmul.mubr.f32.gmra.mrb[0].mxu0 %v504
    %v675 = vpop.f32.mrb[0].mxu0
    %v676 = vadd.f32 %v485, %v675
    %v677 = vpop.f32.mrb[0].mxu0
    %678 = vmatprep.mubr.f32.mxu0 0.0
    %679 = vmatmul.mubr.f32.gmra.mrb[0].mxu0 %v507
    %v680 = vpop.f32.mrb[0].mxu0
    %v681 = vadd.f32 %v485, %v680
    %v682 = vpop.f32.mrb[0].mxu0
    %683 = vmatprep.mubr.f32.mxu0 0.0
    %684 = vmatmul.mubr.f32.gmra.mrb[0].mxu0 %v510
    %v685 = vpop.f32.mrb[0].mxu0
    %v686 = vadd.f32 %v485, %v685
    %v687 = vpop.f32.mrb[0].mxu0
    %688 = vmatprep.mubr.f32.mxu0 0.0
    %689 = vmatmul.mubr.f32.gmra.mrb[0].mxu0 %v513
    %v690 = vpop.f32.mrb[0].mxu0
    %v691 = vadd.f32 %v485, %v690
    %v692 = vpop.f32.mrb[0].mxu0
    %693 = vmatprep.mubr.f32.mxu0 0.0
    %694 = vmatmul.mubr.f32.gmra.mrb[0].mxu0 %v516
    %v695 = vpop.f32.mrb[0].mxu0
    %v696 = vadd.f32 %v485, %v695
    %v697 = vpop.f32.mrb[0].mxu0
    %698 = vmatprep.mubr.f32.mxu0 0.0
    %699 = vmatmul.mubr.f32.gmra.mrb[0].mxu0 %v519
    %v700 = vpop.f32.mrb[0].mxu0
    %v701 = vadd.f32 %v485, %v700
    %v702 = vpop.f32.mrb[0].mxu0
    %703 = vmatprep.mubr.f32.mxu0 0.0
    %704 = vmatmul.mubr.f32.gmra.mrb[0].mxu0 %v522
    %v705 = vpop.f32.mrb[0].mxu0
    %v706 = vadd.f32 %v485, %v705
    %v707 = vpop.f32.mrb[0].mxu0
    %708 = vmatprep.mubr.f32.mxu0 0.0
    %709 = vmatmul.mubr.f32.gmra.mrb[0].mxu0 %v525
    %v710 = vpop.f32.mrb[0].mxu0
    %v711 = vadd.f32 %v485, %v710
    %v712 = vpop.f32.mrb[0].mxu0
    %713 = vmatprep.mubr.f32.mxu0 0.0
    %714 = vmatmul.mubr.f32.gmra.mrb[0].mxu0 %v528
    %v715 = vpop.f32.mrb[0].mxu0
    %v716 = vadd.f32 %v485, %v715
    %v717 = vpop.f32.mrb[0].mxu0
    %718 = vmatprep.mubr.f32.mxu0 0.0
    %719 = vmatmul.mubr.f32.gmra.mrb[0].mxu0 %v531
    %v720 = vpop.f32.mrb[0].mxu0
    %v721 = vadd.f32 %v485, %v720
    %v722 = vpop.f32.mrb[0].mxu0
    %723 = vmatprep.mubr.f32.mxu0 0.0
    %724 = vmatmul.mubr.f32.gmra.mrb[0].mxu0 %v534
    %v725 = vpop.f32.mrb[0].mxu0
    %v726 = vadd.f32 %v485, %v725
    %v727 = vpop.f32.mrb[0].mxu0
    %728 = vmatprep.mubr.f32.mxu0 0.0
    %729 = vmatmul.mubr.f32.gmra.mrb[0].mxu0 %v537
    %v730 = vpop.f32.mrb[0].mxu0
    %v731 = vadd.f32 %v485, %v730
    %v732 = vpop.f32.mrb[0].mxu0
    %733 = vmatprep.mubr.f32.mxu0 0.0
    %734 = vmatmul.mubr.f32.gmra.mrb[0].mxu0 %v540
    %v735 = vpop.f32.mrb[0].mxu0
    %v736 = vadd.f32 %v485, %v735
    %v737 = vpop.f32.mrb[0].mxu0
    %738 = vmatprep.mubr.f32.mxu0 0.0
    %739 = vmatmul.mubr.f32.gmra.mrb[0].mxu0 %v543
    %v740 = vpop.f32.mrb[0].mxu0
    %v741 = vadd.f32 %v485, %v740
    %v742 = vpop.f32.mrb[0].mxu0
    %743 = vmatprep.mubr.f32.mxu0 0.0
    %744 = vmatmul.mubr.f32.gmra.mrb[0].mxu0 %v546
    %v745 = vpop.f32.mrb[0].mxu0
    %v746 = vadd.f32 %v485, %v745
    %v747 = vpop.f32.mrb[0].mxu0
    %748 = vmatprep.mubr.f32.mxu0 0.0
    %749 = vmatmul.mubr.f32.gmra.mrb[0].mxu0 %v549
    %v750 = vpop.f32.mrb[0].mxu0
    %v751 = vadd.f32 %v485, %v750
    %v752 = vpop.f32.mrb[0].mxu0
    %753 = vmatprep.mubr.f32.mxu0 0.0
    %754 = vmatmul.mubr.f32.gmra.mrb[0].mxu0 %v552
    %v755 = vpop.f32.mrb[0].mxu0
    %v756 = vadd.f32 %v485, %v755
    %v757 = vpop.f32.mrb[0].mxu0
    %758 = vmatprep.mubr.f32.mxu0 0.0
    %759 = vmatmul.mubr.f32.gmra.mrb[0].mxu0 %v555
    %v760 = vpop.f32.mrb[0].mxu0
    %v761 = vadd.f32 %v485, %v760
    %v762 = vpop.f32.mrb[0].mxu0
    %763 = vmatprep.mubr.f32.mxu0 0.0
    %764 = vmatmul.mubr.f32.gmra.mrb[0].mxu0 %v558
    %v765 = vpop.f32.mrb[0].mxu0
    %v766 = vadd.f32 %v485, %v765
    %v767 = vpop.f32.mrb[0].mxu0
    %768 = vmatprep.mubr.f32.mxu0 0.0
    %769 = vmatmul.mubr.f32.gmra.mrb[0].mxu0 %v561
    %v770 = vpop.f32.mrb[0].mxu0
    %v771 = vadd.f32 %v485, %v770
    %v772 = vpop.f32.mrb[0].mxu0
    %773 = vmatprep.mubr.f32.mxu0 0.0
    %774 = vmatmul.mubr.f32.gmra.mrb[0].mxu0 %v564
    %v775 = vpop.f32.mrb[0].mxu0
    %v776 = vadd.f32 %v485, %v775
    %v777 = vpop.f32.mrb[0].mxu0
    %778 = vmatprep.mubr.f32.mxu0 0.0
    %779 = vmatmul.mubr.f32.gmra.mrb[0].mxu0 %v567
    %v780 = vpop.f32.mrb[0].mxu0
    %v781 = vadd.f32 %v485, %v780
    %v782 = vpop.f32.mrb[0].mxu0
    %783 = vmatprep.mubr.f32.mxu0 0.0
    %784 = vmatmul.mubr.f32.gmra.mrb[0].mxu0 %v570
    %v785 = vpop.f32.mrb[0].mxu0
    %v786 = vadd.f32 %v485, %v785
    %v787 = vpop.f32.mrb[0].mxu0
    %788 = vmatprep.mubr.f32.mxu0 0.0
    %789 = vmatmul.mubr.f32.gmra.mrb[0].mxu0 %v573
    %v790 = vpop.f32.mrb[0].mxu0
    %v791 = vadd.f32 %v485, %v790
    %v792 = vpop.f32.mrb[0].mxu0
    %793 = vmatprep.mubr.f32.mxu0 0.0
    %794 = vmatmul.mubr.f32.gmra.mrb[0].mxu0 %v576
    %v795 = vpop.f32.mrb[0].mxu0
    %v796 = vadd.f32 %v485, %v795
    %v797 = vpop.f32.mrb[0].mxu0
    %798 = vmatprep.mubr.f32.mxu0 0.0
    %799 = vmatmul.mubr.f32.gmra.mrb[0].mxu0 %v579
    %v800 = vpop.f32.mrb[0].mxu0
    %v801 = vadd.f32 %v485, %v800
    %v802 = vpop.f32.mrb[0].mxu0
    %803 = vmatprep.mubr.f32.mxu0 0.0
    %804 = vmatmul.mubr.f32.gmra.mrb[0].mxu0 %v582
    %v805 = vpop.f32.mrb[0].mxu0
    %v806 = vadd.f32 %v485, %v805
    %v807 = vpop.f32.mrb[0].mxu0
    %808 = vdwg.mxu0
    %v809 = vmax.f32 %v651, 0.0
    %v810 = vmax.f32 %v656, 0.0
    %v811 = vmax.f32 %v661, 0.0
    %v812 = vmax.f32 %v666, 0.0
    %v813 = vmax.f32 %v671, 0.0
    %v814 = vmax.f32 %v676, 0.0
    %v815 = vmax.f32 %v681, 0.0
    %v816 = vmax.f32 %v686, 0.0
    %v817 = vmax.f32 %v691, 0.0
    %v818 = vmax.f32 %v696, 0.0
    %v819 = vmax.f32 %v701, 0.0
    %v820 = vmax.f32 %v706, 0.0
    %v821 = vmax.f32 %v711, 0.0
    %v822 = vmax.f32 %v716, 0.0
    %v823 = vmax.f32 %v721, 0.0
    %v824 = vmax.f32 %v726, 0.0
    %v825 = vmax.f32 %v731, 0.0
    %v826 = vmax.f32 %v736, 0.0
    %v827 = vmax.f32 %v741, 0.0
    %v828 = vmax.f32 %v746, 0.0
    %v829 = vmax.f32 %v751, 0.0
    %v830 = vmax.f32 %v756, 0.0
    %v831 = vmax.f32 %v761, 0.0
    %v832 = vmax.f32 %v766, 0.0
    %v833 = vmax.f32 %v771, 0.0
    %v834 = vmax.f32 %v776, 0.0
    %v835 = vmax.f32 %v781, 0.0
    %v836 = vmax.f32 %v786, 0.0
    %v837 = vmax.f32 %v791, 0.0
    %v838 = vmax.f32 %v796, 0.0
    %v839 = vmax.f32 %v801, 0.0
    %v840 = vmax.f32 %v806, 0.0
    %v841 = vld [vmem:[%s10] sm:$0xff]
    %v842 = vld [vmem:[%s10 + $0x8] sm:$0xf]
    %v843 = vld [vmem:[%s11] sm:$0x1]
    %v845 = vlaneseq
    %v846 = vshrl.u32 %v845, 7
    %v847 = vsub.s32 0, %v846
    %v848 = vrot.slane %v843, %v847
    %vm850 = vcmask 97280
    %v852 = vsel %vm850, %v809, 0
    %v855 = vsel %vm850, %v810, 0
    %v858 = vsel %vm850, %v811, 0
    %v861 = vsel %vm850, %v812, 0
    %v864 = vsel %vm850, %v813, 0
    %v867 = vsel %vm850, %v814, 0
    %v870 = vsel %vm850, %v815, 0
    %v873 = vsel %vm850, %v816, 0
    %v876 = vsel %vm850, %v817, 0
    %v879 = vsel %vm850, %v818, 0
    %v882 = vsel %vm850, %v819, 0
    %v885 = vsel %vm850, %v820, 0
    %v888 = vsel %vm850, %v821, 0
    %v891 = vsel %vm850, %v822, 0
    %v894 = vsel %vm850, %v823, 0
    %v897 = vsel %vm850, %v824, 0
    %v900 = vsel %vm850, %v825, 0
    %v903 = vsel %vm850, %v826, 0
    %v906 = vsel %vm850, %v827, 0
    %v909 = vsel %vm850, %v828, 0
    %v912 = vsel %vm850, %v829, 0
    %v915 = vsel %vm850, %v830, 0
    %v918 = vsel %vm850, %v831, 0
    %v921 = vsel %vm850, %v832, 0
    %v924 = vsel %vm850, %v833, 0
    %v927 = vsel %vm850, %v834, 0
    %v930 = vsel %vm850, %v835, 0
    %v933 = vsel %vm850, %v836, 0
    %v936 = vsel %vm850, %v837, 0
    %v939 = vsel %vm850, %v838, 0
    %v942 = vsel %vm850, %v839, 0
    %v945 = vsel %vm850, %v840, 0
    %v948 = vsel %vm217, %v842, 0
    %950 = vmatprep.subr.mxu0 0.0
    %951 = vmatpush1.msra.mxu0 %v841
    %952 = vmatprep.subr.mxu0 0.0
    %953 = vmatpush1.msra.mxu0 %v948
    %954 = vmatprep.subr.mxu0 0.0
    %955 = vmatpush1.msra.mxu0 0.0
    %956 = vmatprep.subr.mxu0 0.0
    %957 = vmatpush1.msra.mxu0 0.0
    %958 = vmatprep.subr.mxu0 0.0
    %959 = vmatpush1.msra.mxu0 0.0
    %960 = vmatprep.subr.mxu0 0.0
    %961 = vmatpush1.msra.mxu0 0.0
    %962 = vmatprep.subr.mxu0 0.0
    %963 = vmatpush1.msra.mxu0 0.0
    %964 = vmatprep.subr.mxu0 0.0
    %965 = vmatpush1.msra.mxu0 0.0
    %966 = vmatprep.subr.mxu0 0.0
    %967 = vmatpush1.msra.mxu0 0.0
    %968 = vmatprep.subr.mxu0 0.0
    %969 = vmatpush1.msra.mxu0 0.0
    %970 = vmatprep.subr.mxu0 0.0
    %971 = vmatpush1.msra.mxu0 0.0
    %972 = vmatprep.subr.mxu0 0.0
    %973 = vmatpush1.msra.mxu0 0.0
    %974 = vmatprep.subr.mxu0 0.0
    %975 = vmatpush1.msra.mxu0 0.0
    %976 = vmatprep.subr.mxu0 0.0
    %977 = vmatpush1.msra.mxu0 0.0
    %978 = vmatprep.subr.mxu0 0.0
    %979 = vmatpush1.msra.mxu0 0.0
    %980 = vmatprep.subr.mxu0 0.0
    %981 = vmatpush1.msra.mxu0 0.0
    %982 = vmatprep.subr.mxu0 0.0
    %983 = vmatpush1.msra.mxu0 0.0
    %984 = vmatprep.subr.mxu0 0.0
    %985 = vmatpush1.msra.mxu0 0.0
    %986 = vmatprep.subr.mxu0 0.0
    %987 = vmatpush1.msra.mxu0 0.0
    %988 = vmatprep.subr.mxu0 0.0
    %989 = vmatpush1.msra.mxu0 0.0
    %990 = vmatprep.subr.mxu0 0.0
    %991 = vmatpush1.msra.mxu0 0.0
    %992 = vmatprep.subr.mxu0 0.0
    %993 = vmatpush1.msra.mxu0 0.0
    %994 = vmatprep.subr.mxu0 0.0
    %995 = vmatpush1.msra.mxu0 0.0
    %996 = vmatprep.subr.mxu0 0.0
    %997 = vmatpush1.msra.mxu0 0.0
    %998 = vmatprep.subr.mxu0 0.0
    %999 = vmatpush1.msra.mxu0 0.0
    %1000 = vmatprep.subr.mxu0 0.0
    %1001 = vmatpush1.msra.mxu0 0.0
    %1002 = vmatprep.subr.mxu0 0.0
    %1003 = vmatpush1.msra.mxu0 0.0
    %1004 = vmatprep.subr.mxu0 0.0
    %1005 = vmatpush1.msra.mxu0 0.0
    %1006 = vmatprep.subr.mxu0 0.0
    %1007 = vmatpush1.msra.mxu0 0.0
    %1008 = vmatprep.subr.mxu0 0.0
    %1009 = vmatpush1.msra.mxu0 0.0
    %1010 = vmatprep.subr.mxu0 0.0
    %1011 = vmatpush1.msra.mxu0 0.0
    %1012 = vmatprep.subr.mxu0 0.0
    %1013 = vmatpush1.msra.mxu0 0.0
    %1014 = vmatprep.mubr.f32.mxu0 0.0
    %1015 = vmatmul.mubr.f32.gmra.mrb[0].mxu0 %v852
    %v1016 = vpop.f32.mrb[0].mxu0
    %v1017 = vadd.f32 %v848, %v1016
    %v1018 = vpop.f32.mrb[0].mxu0
    %1019 = vmatprep.mubr.f32.mxu0 0.0
    %1020 = vmatmul.mubr.f32.gmra.mrb[0].mxu0 %v855
    %v1021 = vpop.f32.mrb[0].mxu0
    %v1022 = vadd.f32 %v848, %v1021
    %v1023 = vpop.f32.mrb[0].mxu0
    %1024 = vmatprep.mubr.f32.mxu0 0.0
    %1025 = vmatmul.mubr.f32.gmra.mrb[0].mxu0 %v858
    %v1026 = vpop.f32.mrb[0].mxu0
    %v1027 = vadd.f32 %v848, %v1026
    %v1028 = vpop.f32.mrb[0].mxu0
    %1029 = vmatprep.mubr.f32.mxu0 0.0
    %1030 = vmatmul.mubr.f32.gmra.mrb[0].mxu0 %v861
    %v1031 = vpop.f32.mrb[0].mxu0
    %v1032 = vadd.f32 %v848, %v1031
    %v1033 = vpop.f32.mrb[0].mxu0
    %1034 = vmatprep.mubr.f32.mxu0 0.0
    %1035 = vmatmul.mubr.f32.gmra.mrb[0].mxu0 %v864
    %v1036 = vpop.f32.mrb[0].mxu0
    %v1037 = vadd.f32 %v848, %v1036
    %v1038 = vpop.f32.mrb[0].mxu0
    %1039 = vmatprep.mubr.f32.mxu0 0.0
    %1040 = vmatmul.mubr.f32.gmra.mrb[0].mxu0 %v867
    %v1041 = vpop.f32.mrb[0].mxu0
    %v1042 = vadd.f32 %v848, %v1041
    %v1043 = vpop.f32.mrb[0].mxu0
    %1044 = vmatprep.mubr.f32.mxu0 0.0
    %1045 = vmatmul.mubr.f32.gmra.mrb[0].mxu0 %v870
    %v1046 = vpop.f32.mrb[0].mxu0
    %v1047 = vadd.f32 %v848, %v1046
    %v1048 = vpop.f32.mrb[0].mxu0
    %1049 = vmatprep.mubr.f32.mxu0 0.0
    %1050 = vmatmul.mubr.f32.gmra.mrb[0].mxu0 %v873
    %v1051 = vpop.f32.mrb[0].mxu0
    %v1052 = vadd.f32 %v848, %v1051
    %v1053 = vpop.f32.mrb[0].mxu0
    %1054 = vmatprep.mubr.f32.mxu0 0.0
    %1055 = vmatmul.mubr.f32.gmra.mrb[0].mxu0 %v876
    %v1056 = vpop.f32.mrb[0].mxu0
    %v1057 = vadd.f32 %v848, %v1056
    %v1058 = vpop.f32.mrb[0].mxu0
    %1059 = vmatprep.mubr.f32.mxu0 0.0
    %1060 = vmatmul.mubr.f32.gmra.mrb[0].mxu0 %v879
    %v1061 = vpop.f32.mrb[0].mxu0
    %v1062 = vadd.f32 %v848, %v1061
    %v1063 = vpop.f32.mrb[0].mxu0
    %1064 = vmatprep.mubr.f32.mxu0 0.0
    %1065 = vmatmul.mubr.f32.gmra.mrb[0].mxu0 %v882
    %v1066 = vpop.f32.mrb[0].mxu0
    %v1067 = vadd.f32 %v848, %v1066
    %v1068 = vpop.f32.mrb[0].mxu0
    %1069 = vmatprep.mubr.f32.mxu0 0.0
    %1070 = vmatmul.mubr.f32.gmra.mrb[0].mxu0 %v885
    %v1071 = vpop.f32.mrb[0].mxu0
    %v1072 = vadd.f32 %v848, %v1071
    %v1073 = vpop.f32.mrb[0].mxu0
    %1074 = vmatprep.mubr.f32.mxu0 0.0
    %1075 = vmatmul.mubr.f32.gmra.mrb[0].mxu0 %v888
    %v1076 = vpop.f32.mrb[0].mxu0
    %v1077 = vadd.f32 %v848, %v1076
    %v1078 = vpop.f32.mrb[0].mxu0
    %1079 = vmatprep.mubr.f32.mxu0 0.0
    %1080 = vmatmul.mubr.f32.gmra.mrb[0].mxu0 %v891
    %v1081 = vpop.f32.mrb[0].mxu0
    %v1082 = vadd.f32 %v848, %v1081
    %v1083 = vpop.f32.mrb[0].mxu0
    %1084 = vmatprep.mubr.f32.mxu0 0.0
    %1085 = vmatmul.mubr.f32.gmra.mrb[0].mxu0 %v894
    %v1086 = vpop.f32.mrb[0].mxu0
    %v1087 = vadd.f32 %v848, %v1086
    %v1088 = vpop.f32.mrb[0].mxu0
    %1089 = vmatprep.mubr.f32.mxu0 0.0
    %1090 = vmatmul.mubr.f32.gmra.mrb[0].mxu0 %v897
    %v1091 = vpop.f32.mrb[0].mxu0
    %v1092 = vadd.f32 %v848, %v1091
    %v1093 = vpop.f32.mrb[0].mxu0
    %1094 = vmatprep.mubr.f32.mxu0 0.0
    %1095 = vmatmul.mubr.f32.gmra.mrb[0].mxu0 %v900
    %v1096 = vpop.f32.mrb[0].mxu0
    %v1097 = vadd.f32 %v848, %v1096
    %v1098 = vpop.f32.mrb[0].mxu0
    %1099 = vmatprep.mubr.f32.mxu0 0.0
    %1100 = vmatmul.mubr.f32.gmra.mrb[0].mxu0 %v903
    %v1101 = vpop.f32.mrb[0].mxu0
    %v1102 = vadd.f32 %v848, %v1101
    %v1103 = vpop.f32.mrb[0].mxu0
    %1104 = vmatprep.mubr.f32.mxu0 0.0
    %1105 = vmatmul.mubr.f32.gmra.mrb[0].mxu0 %v906
    %v1106 = vpop.f32.mrb[0].mxu0
    %v1107 = vadd.f32 %v848, %v1106
    %v1108 = vpop.f32.mrb[0].mxu0
    %1109 = vmatprep.mubr.f32.mxu0 0.0
    %1110 = vmatmul.mubr.f32.gmra.mrb[0].mxu0 %v909
    %v1111 = vpop.f32.mrb[0].mxu0
    %v1112 = vadd.f32 %v848, %v1111
    %v1113 = vpop.f32.mrb[0].mxu0
    %1114 = vmatprep.mubr.f32.mxu0 0.0
    %1115 = vmatmul.mubr.f32.gmra.mrb[0].mxu0 %v912
    %v1116 = vpop.f32.mrb[0].mxu0
    %v1117 = vadd.f32 %v848, %v1116
    %v1118 = vpop.f32.mrb[0].mxu0
    %1119 = vmatprep.mubr.f32.mxu0 0.0
    %1120 = vmatmul.mubr.f32.gmra.mrb[0].mxu0 %v915
    %v1121 = vpop.f32.mrb[0].mxu0
    %v1122 = vadd.f32 %v848, %v1121
    %v1123 = vpop.f32.mrb[0].mxu0
    %1124 = vmatprep.mubr.f32.mxu0 0.0
    %1125 = vmatmul.mubr.f32.gmra.mrb[0].mxu0 %v918
    %v1126 = vpop.f32.mrb[0].mxu0
    %v1127 = vadd.f32 %v848, %v1126
    %v1128 = vpop.f32.mrb[0].mxu0
    %1129 = vmatprep.mubr.f32.mxu0 0.0
    %1130 = vmatmul.mubr.f32.gmra.mrb[0].mxu0 %v921
    %v1131 = vpop.f32.mrb[0].mxu0
    %v1132 = vadd.f32 %v848, %v1131
    %v1133 = vpop.f32.mrb[0].mxu0
    %1134 = vmatprep.mubr.f32.mxu0 0.0
    %1135 = vmatmul.mubr.f32.gmra.mrb[0].mxu0 %v924
    %v1136 = vpop.f32.mrb[0].mxu0
    %v1137 = vadd.f32 %v848, %v1136
    %v1138 = vpop.f32.mrb[0].mxu0
    %1139 = vmatprep.mubr.f32.mxu0 0.0
    %1140 = vmatmul.mubr.f32.gmra.mrb[0].mxu0 %v927
    %v1141 = vpop.f32.mrb[0].mxu0
    %v1142 = vadd.f32 %v848, %v1141
    %v1143 = vpop.f32.mrb[0].mxu0
    %1144 = vmatprep.mubr.f32.mxu0 0.0
    %1145 = vmatmul.mubr.f32.gmra.mrb[0].mxu0 %v930
    %v1146 = vpop.f32.mrb[0].mxu0
    %v1147 = vadd.f32 %v848, %v1146
    %v1148 = vpop.f32.mrb[0].mxu0
    %1149 = vmatprep.mubr.f32.mxu0 0.0
    %1150 = vmatmul.mubr.f32.gmra.mrb[0].mxu0 %v933
    %v1151 = vpop.f32.mrb[0].mxu0
    %v1152 = vadd.f32 %v848, %v1151
    %v1153 = vpop.f32.mrb[0].mxu0
    %1154 = vmatprep.mubr.f32.mxu0 0.0
    %1155 = vmatmul.mubr.f32.gmra.mrb[0].mxu0 %v936
    %v1156 = vpop.f32.mrb[0].mxu0
    %v1157 = vadd.f32 %v848, %v1156
    %v1158 = vpop.f32.mrb[0].mxu0
    %1159 = vmatprep.mubr.f32.mxu0 0.0
    %1160 = vmatmul.mubr.f32.gmra.mrb[0].mxu0 %v939
    %v1161 = vpop.f32.mrb[0].mxu0
    %v1162 = vadd.f32 %v848, %v1161
    %v1163 = vpop.f32.mrb[0].mxu0
    %1164 = vmatprep.mubr.f32.mxu0 0.0
    %1165 = vmatmul.mubr.f32.gmra.mrb[0].mxu0 %v942
    %v1166 = vpop.f32.mrb[0].mxu0
    %v1167 = vadd.f32 %v848, %v1166
    %v1168 = vpop.f32.mrb[0].mxu0
    %1169 = vmatprep.mubr.f32.mxu0 0.0
    %1170 = vmatmul.mubr.f32.gmra.mrb[0].mxu0 %v945
    %v1171 = vpop.f32.mrb[0].mxu0
    %v1172 = vadd.f32 %v848, %v1171
    %v1173 = vpop.f32.mrb[0].mxu0
    %1174 = vdwg.mxu0
    %v1175 = vmax.f32 %v1017, 0.0
    %v1176 = vmax.f32 %v1022, 0.0
    %v1177 = vmax.f32 %v1027, 0.0
    %v1178 = vmax.f32 %v1032, 0.0
    %v1179 = vmax.f32 %v1037, 0.0
    %v1180 = vmax.f32 %v1042, 0.0
    %v1181 = vmax.f32 %v1047, 0.0
    %v1182 = vmax.f32 %v1052, 0.0
    %v1183 = vmax.f32 %v1057, 0.0
    %v1184 = vmax.f32 %v1062, 0.0
    %v1185 = vmax.f32 %v1067, 0.0
    %v1186 = vmax.f32 %v1072, 0.0
    %v1187 = vmax.f32 %v1077, 0.0
    %v1188 = vmax.f32 %v1082, 0.0
    %v1189 = vmax.f32 %v1087, 0.0
    %v1190 = vmax.f32 %v1092, 0.0
    %v1191 = vmax.f32 %v1097, 0.0
    %v1192 = vmax.f32 %v1102, 0.0
    %v1193 = vmax.f32 %v1107, 0.0
    %v1194 = vmax.f32 %v1112, 0.0
    %v1195 = vmax.f32 %v1117, 0.0
    %v1196 = vmax.f32 %v1122, 0.0
    %v1197 = vmax.f32 %v1127, 0.0
    %v1198 = vmax.f32 %v1132, 0.0
    %v1199 = vmax.f32 %v1137, 0.0
    %v1200 = vmax.f32 %v1142, 0.0
    %v1201 = vmax.f32 %v1147, 0.0
    %v1202 = vmax.f32 %v1152, 0.0
    %v1203 = vmax.f32 %v1157, 0.0
    %v1204 = vmax.f32 %v1162, 0.0
    %v1205 = vmax.f32 %v1167, 0.0
    %v1206 = vmax.f32 %v1172, 0.0
    %v1207 = vld [vmem:[%s2] sm:$0xff]
    %v1208 = vld [vmem:[%s2 + $0x8] sm:$0xff]
    %v1209 = vlaneseq
    %v1210 = vshrl.u32 %v1209, 7
    %v1211 = vsub.s32 0, %v1210
    %v1212 = vrot.slane %v1207, %v1211
    %1214 = vbcast.lane.b32.xlu0 %v1212, 256
    %v1215 = vpop.permute.xlu0 %1214
    %v1216 = vlaneseq
    %v1217 = vshrl.u32 %v1216, 7
    %v1218 = vsub.s32 1, %v1217
    %v1219 = vrot.slane %v1207, %v1218
    %1221 = vbcast.lane.b32.xlu0 %v1219, 256
    %v1222 = vpop.permute.xlu0 %1221
    %v1223 = vlaneseq
    %v1224 = vshrl.u32 %v1223, 7
    %v1225 = vsub.s32 2, %v1224
    %v1226 = vrot.slane %v1207, %v1225
    %1228 = vbcast.lane.b32.xlu0 %v1226, 256
    %v1229 = vpop.permute.xlu0 %1228
    %v1230 = vlaneseq
    %v1231 = vshrl.u32 %v1230, 7
    %v1232 = vsub.s32 3, %v1231
    %v1233 = vrot.slane %v1207, %v1232
    %1235 = vbcast.lane.b32.xlu0 %v1233, 256
    %v1236 = vpop.permute.xlu0 %1235
    %v1237 = vlaneseq
    %v1238 = vshrl.u32 %v1237, 7
    %v1239 = vsub.s32 4, %v1238
    %v1240 = vrot.slane %v1207, %v1239
    %1242 = vbcast.lane.b32.xlu0 %v1240, 256
    %v1243 = vpop.permute.xlu0 %1242
    %v1244 = vlaneseq
    %v1245 = vshrl.u32 %v1244, 7
    %v1246 = vsub.s32 5, %v1245
    %v1247 = vrot.slane %v1207, %v1246
    %1249 = vbcast.lane.b32.xlu0 %v1247, 256
    %v1250 = vpop.permute.xlu0 %1249
    %v1251 = vlaneseq
    %v1252 = vshrl.u32 %v1251, 7
    %v1253 = vsub.s32 6, %v1252
    %v1254 = vrot.slane %v1207, %v1253
    %1256 = vbcast.lane.b32.xlu0 %v1254, 256
    %v1257 = vpop.permute.xlu0 %1256
    %v1258 = vlaneseq
    %v1259 = vshrl.u32 %v1258, 7
    %v1260 = vsub.s32 7, %v1259
    %v1261 = vrot.slane %v1207, %v1260
    %1263 = vbcast.lane.b32.xlu0 %v1261, 256
    %v1264 = vpop.permute.xlu0 %1263
    %v1265 = vlaneseq
    %v1266 = vshrl.u32 %v1265, 7
    %v1267 = vsub.s32 0, %v1266
    %v1268 = vrot.slane %v1208, %v1267
    %1270 = vbcast.lane.b32.xlu0 %v1268, 256
    %v1271 = vpop.permute.xlu0 %1270
    %v1272 = vlaneseq
    %v1273 = vshrl.u32 %v1272, 7
    %v1274 = vsub.s32 1, %v1273
    %v1275 = vrot.slane %v1208, %v1274
    %1277 = vbcast.lane.b32.xlu0 %v1275, 256
    %v1278 = vpop.permute.xlu0 %1277
    %v1279 = vlaneseq
    %v1280 = vshrl.u32 %v1279, 7
    %v1281 = vsub.s32 2, %v1280
    %v1282 = vrot.slane %v1208, %v1281
    %1284 = vbcast.lane.b32.xlu0 %v1282, 256
    %v1285 = vpop.permute.xlu0 %1284
    %v1286 = vlaneseq
    %v1287 = vshrl.u32 %v1286, 7
    %v1288 = vsub.s32 3, %v1287
    %v1289 = vrot.slane %v1208, %v1288
    %1291 = vbcast.lane.b32.xlu0 %v1289, 256
    %v1292 = vpop.permute.xlu0 %1291
    %v1293 = vlaneseq
    %v1294 = vshrl.u32 %v1293, 7
    %v1295 = vsub.s32 4, %v1294
    %v1296 = vrot.slane %v1208, %v1295
    %1298 = vbcast.lane.b32.xlu0 %v1296, 256
    %v1299 = vpop.permute.xlu0 %1298
    %v1300 = vlaneseq
    %v1301 = vshrl.u32 %v1300, 7
    %v1302 = vsub.s32 5, %v1301
    %v1303 = vrot.slane %v1208, %v1302
    %1305 = vbcast.lane.b32.xlu0 %v1303, 256
    %v1306 = vpop.permute.xlu0 %1305
    %v1307 = vlaneseq
    %v1308 = vshrl.u32 %v1307, 7
    %v1309 = vsub.s32 6, %v1308
    %v1310 = vrot.slane %v1208, %v1309
    %1312 = vbcast.lane.b32.xlu0 %v1310, 256
    %v1313 = vpop.permute.xlu0 %1312
    %v1314 = vlaneseq
    %v1315 = vshrl.u32 %v1314, 7
    %v1316 = vsub.s32 7, %v1315
    %v1317 = vrot.slane %v1208, %v1316
    %1319 = vbcast.lane.b32.xlu0 %v1317, 256
    %v1320 = vpop.permute.xlu0 %1319
    %v1321 = vmul.f32 %v1175, %v1215
    %v1322 = vmul.f32 %v1176, %v1222
    %v1323 = vmul.f32 %v1177, %v1229
    %v1324 = vmul.f32 %v1178, %v1236
    %v1325 = vmul.f32 %v1179, %v1243
    %v1326 = vmul.f32 %v1180, %v1250
    %v1327 = vmul.f32 %v1181, %v1257
    %v1328 = vmul.f32 %v1182, %v1264
    %v1329 = vmul.f32 %v1183, %v1271
    %v1330 = vmul.f32 %v1184, %v1278
    %v1331 = vmul.f32 %v1185, %v1285
    %v1332 = vmul.f32 %v1186, %v1292
    %v1333 = vmul.f32 %v1187, %v1299
    %v1334 = vmul.f32 %v1188, %v1306
    %v1335 = vmul.f32 %v1189, %v1313
    %v1336 = vmul.f32 %v1190, %v1320
    %vm1337 = vcmask 31744
    %v1338 = vsel %vm1337, %v1321, 0.0
    %v1339 = vrot.slane %v1338, 4
    %v1340 = vadd.f32 %v1338, %v1339
    %v1341 = vrot.slane %v1340, 2
    %v1342 = vadd.f32 %v1340, %v1341
    %v1343 = vrot.slane %v1342, 1
    %v1344 = vadd.f32 %v1342, %v1343
    %v1345 = vsel %vm1337, %v1322, 0.0
    %v1346 = vrot.slane %v1345, 4
    %v1347 = vadd.f32 %v1345, %v1346
    %v1348 = vrot.slane %v1347, 2
    %v1349 = vadd.f32 %v1347, %v1348
    %v1350 = vrot.slane %v1349, 1
    %v1351 = vadd.f32 %v1349, %v1350
    %v1352 = vsel %vm1337, %v1323, 0.0
    %v1353 = vrot.slane %v1352, 4
    %v1354 = vadd.f32 %v1352, %v1353
    %v1355 = vrot.slane %v1354, 2
    %v1356 = vadd.f32 %v1354, %v1355
    %v1357 = vrot.slane %v1356, 1
    %v1358 = vadd.f32 %v1356, %v1357
    %v1359 = vsel %vm1337, %v1324, 0.0
    %v1360 = vrot.slane %v1359, 4
    %v1361 = vadd.f32 %v1359, %v1360
    %v1362 = vrot.slane %v1361, 2
    %v1363 = vadd.f32 %v1361, %v1362
    %v1364 = vrot.slane %v1363, 1
    %v1365 = vadd.f32 %v1363, %v1364
    %v1366 = vsel %vm1337, %v1325, 0.0
    %v1367 = vrot.slane %v1366, 4
    %v1368 = vadd.f32 %v1366, %v1367
    %v1369 = vrot.slane %v1368, 2
    %v1370 = vadd.f32 %v1368, %v1369
    %v1371 = vrot.slane %v1370, 1
    %v1372 = vadd.f32 %v1370, %v1371
    %v1373 = vsel %vm1337, %v1326, 0.0
    %v1374 = vrot.slane %v1373, 4
    %v1375 = vadd.f32 %v1373, %v1374
    %v1376 = vrot.slane %v1375, 2
    %v1377 = vadd.f32 %v1375, %v1376
    %v1378 = vrot.slane %v1377, 1
    %v1379 = vadd.f32 %v1377, %v1378
    %v1380 = vsel %vm1337, %v1327, 0.0
    %v1381 = vrot.slane %v1380, 4
    %v1382 = vadd.f32 %v1380, %v1381
    %v1383 = vrot.slane %v1382, 2
    %v1384 = vadd.f32 %v1382, %v1383
    %v1385 = vrot.slane %v1384, 1
    %v1386 = vadd.f32 %v1384, %v1385
    %v1387 = vsel %vm1337, %v1328, 0.0
    %v1388 = vrot.slane %v1387, 4
    %v1389 = vadd.f32 %v1387, %v1388
    %v1390 = vrot.slane %v1389, 2
    %v1391 = vadd.f32 %v1389, %v1390
    %v1392 = vrot.slane %v1391, 1
    %v1393 = vadd.f32 %v1391, %v1392
    %v1394 = vsel %vm1337, %v1329, 0.0
    %v1395 = vrot.slane %v1394, 4
    %v1396 = vadd.f32 %v1394, %v1395
    %v1397 = vrot.slane %v1396, 2
    %v1398 = vadd.f32 %v1396, %v1397
    %v1399 = vrot.slane %v1398, 1
    %v1400 = vadd.f32 %v1398, %v1399
    %v1401 = vsel %vm1337, %v1330, 0.0
    %v1402 = vrot.slane %v1401, 4
    %v1403 = vadd.f32 %v1401, %v1402
    %v1404 = vrot.slane %v1403, 2
    %v1405 = vadd.f32 %v1403, %v1404
    %v1406 = vrot.slane %v1405, 1
    %v1407 = vadd.f32 %v1405, %v1406
    %v1408 = vsel %vm1337, %v1331, 0.0
    %v1409 = vrot.slane %v1408, 4
    %v1410 = vadd.f32 %v1408, %v1409
    %v1411 = vrot.slane %v1410, 2
    %v1412 = vadd.f32 %v1410, %v1411
    %v1413 = vrot.slane %v1412, 1
    %v1414 = vadd.f32 %v1412, %v1413
    %v1415 = vsel %vm1337, %v1332, 0.0
    %v1416 = vrot.slane %v1415, 4
    %v1417 = vadd.f32 %v1415, %v1416
    %v1418 = vrot.slane %v1417, 2
    %v1419 = vadd.f32 %v1417, %v1418
    %v1420 = vrot.slane %v1419, 1
    %v1421 = vadd.f32 %v1419, %v1420
    %v1422 = vsel %vm1337, %v1333, 0.0
    %v1423 = vrot.slane %v1422, 4
    %v1424 = vadd.f32 %v1422, %v1423
    %v1425 = vrot.slane %v1424, 2
    %v1426 = vadd.f32 %v1424, %v1425
    %v1427 = vrot.slane %v1426, 1
    %v1428 = vadd.f32 %v1426, %v1427
    %v1429 = vsel %vm1337, %v1334, 0.0
    %v1430 = vrot.slane %v1429, 4
    %v1431 = vadd.f32 %v1429, %v1430
    %v1432 = vrot.slane %v1431, 2
    %v1433 = vadd.f32 %v1431, %v1432
    %v1434 = vrot.slane %v1433, 1
    %v1435 = vadd.f32 %v1433, %v1434
    %v1436 = vsel %vm1337, %v1335, 0.0
    %v1437 = vrot.slane %v1436, 4
    %v1438 = vadd.f32 %v1436, %v1437
    %v1439 = vrot.slane %v1438, 2
    %v1440 = vadd.f32 %v1438, %v1439
    %v1441 = vrot.slane %v1440, 1
    %v1442 = vadd.f32 %v1440, %v1441
    %v1443 = vsel %vm1337, %v1336, 0.0
    %v1444 = vrot.slane %v1443, 4
    %v1445 = vadd.f32 %v1443, %v1444
    %v1446 = vrot.slane %v1445, 2
    %v1447 = vadd.f32 %v1445, %v1446
    %v1448 = vrot.slane %v1447, 1
    %v1449 = vadd.f32 %v1447, %v1448
    %vm1450 = vcmask 64512
    %v1451 = vsel %vm1450, %v1207, 0.0
    %1452 = vadd.xlane.f32.xlu0 %v1451
    %v1453 = vpop.xlane.xlu0 %1452
    %v1454 = vsel %vm1450, %v1208, 0.0
    %1455 = vadd.xlane.f32.xlu0 %v1454
    %v1456 = vpop.xlane.xlu0 %1455
    %v1457 = vadd.f32 %v1453, 0.001
    %v1458 = vadd.f32 %v1456, 0.001
    %v1459 = vrcp.pop %v1457
    %v1460 = vrcp.pop %v1458
    %v1461 = vmul.f32 %v1457, %v1459
    %v1462 = vmul.f32 %v1458, %v1460
    %v1463 = vsub.f32 2.0, %v1461
    %v1464 = vsub.f32 2.0, %v1462
    %v1465 = vmul.f32 %v1459, %v1463
    %v1466 = vmul.f32 %v1460, %v1464
    %v1469 = vrot.slane %v1465, 1
    %v1470 = vrot.slane %v1465, 2
    %v1471 = vrot.slane %v1465, 3
    %v1472 = vrot.slane %v1465, 4
    %v1473 = vrot.slane %v1465, 5
    %v1474 = vrot.slane %v1465, 6
    %v1475 = vrot.slane %v1465, 7
    %v1476 = vrot.slane %v1466, 1
    %v1477 = vrot.slane %v1466, 2
    %v1478 = vrot.slane %v1466, 3
    %v1479 = vrot.slane %v1466, 4
    %v1480 = vrot.slane %v1466, 5
    %v1481 = vrot.slane %v1466, 6
    %v1482 = vrot.slane %v1466, 7
    %v1499 = vmul.f32 %v1344, %v1465
    %v1500 = vmul.f32 %v1351, %v1469
    %v1501 = vmul.f32 %v1358, %v1470
    %v1502 = vmul.f32 %v1365, %v1471
    %v1503 = vmul.f32 %v1372, %v1472
    %v1504 = vmul.f32 %v1379, %v1473
    %v1505 = vmul.f32 %v1386, %v1474
    %v1506 = vmul.f32 %v1393, %v1475
    %v1507 = vmul.f32 %v1400, %v1466
    %v1508 = vmul.f32 %v1407, %v1476
    %v1509 = vmul.f32 %v1414, %v1477
    %v1510 = vmul.f32 %v1421, %v1478
    %v1511 = vmul.f32 %v1428, %v1479
    %v1512 = vmul.f32 %v1435, %v1480
    %v1513 = vmul.f32 %v1442, %v1481
    %v1514 = vmul.f32 %v1449, %v1482
    %v1515 = vld [vmem:[%s4] sm:$0xff]
    %v1516 = vld [vmem:[%s4 + $0x8] sm:$0xff]
    %1518 = vset.pattern.permute.xlu0 0
    %1519 = vperm.xlu0 %1518, %v1515
    %v1520 = vpop.permute.xlu0 %1519
    %1522 = vset.pattern.permute.xlu0 0
    %1523 = vperm.xlu0 %1522, %v1516
    %v1524 = vpop.permute.xlu0 %1523
    %v1525 = vrot.slane %v1520, 1
    %v1526 = vrot.slane %v1520, 2
    %v1527 = vrot.slane %v1520, 3
    %v1528 = vrot.slane %v1520, 4
    %v1529 = vrot.slane %v1520, 5
    %v1530 = vrot.slane %v1520, 6
    %v1531 = vrot.slane %v1520, 7
    %v1532 = vrot.slane %v1524, 1
    %v1533 = vrot.slane %v1524, 2
    %v1534 = vrot.slane %v1524, 3
    %v1535 = vrot.slane %v1524, 4
    %v1536 = vrot.slane %v1524, 5
    %v1537 = vrot.slane %v1524, 6
    %v1538 = vrot.slane %v1524, 7
    %v1555 = vmul.f32 %v1499, %v1520
    %v1556 = vmul.f32 %v1500, %v1525
    %v1557 = vmul.f32 %v1501, %v1526
    %v1558 = vmul.f32 %v1502, %v1527
    %v1559 = vmul.f32 %v1503, %v1528
    %v1560 = vmul.f32 %v1504, %v1529
    %v1561 = vmul.f32 %v1505, %v1530
    %v1562 = vmul.f32 %v1506, %v1531
    %v1563 = vmul.f32 %v1507, %v1524
    %v1564 = vmul.f32 %v1508, %v1532
    %v1565 = vmul.f32 %v1509, %v1533
    %v1566 = vmul.f32 %v1510, %v1534
    %v1567 = vmul.f32 %v1511, %v1535
    %v1568 = vmul.f32 %v1512, %v1536
    %v1569 = vmul.f32 %v1513, %v1537
    %v1570 = vmul.f32 %v1514, %v1538
    %v1587 = vrot.slane %v1556, 7
    %vm1588 = vcmask 1041409
    %v1589 = vsel %vm1588, %v1587, %v1555
    %v1590 = vrot.slane %v1557, 6
    %vm1591 = vcmask 1042434
    %v1592 = vsel %vm1591, %v1590, %v1589
    %v1593 = vrot.slane %v1558, 5
    %vm1594 = vcmask 1043459
    %v1595 = vsel %vm1594, %v1593, %v1592
    %v1596 = vrot.slane %v1559, 4
    %vm1597 = vcmask 1044484
    %v1598 = vsel %vm1597, %v1596, %v1595
    %v1599 = vrot.slane %v1560, 3
    %vm1600 = vcmask 1045509
    %v1601 = vsel %vm1600, %v1599, %v1598
    %v1602 = vrot.slane %v1561, 2
    %vm1603 = vcmask 1046534
    %v1604 = vsel %vm1603, %v1602, %v1601
    %v1605 = vrot.slane %v1562, 1
    %vm1606 = vcmask 1047559
    %v1607 = vsel %vm1606, %v1605, %v1604
    %v1608 = vrot.slane %v1564, 7
    %v1609 = vsel %vm1588, %v1608, %v1563
    %v1610 = vrot.slane %v1565, 6
    %v1611 = vsel %vm1591, %v1610, %v1609
    %v1612 = vrot.slane %v1566, 5
    %v1613 = vsel %vm1594, %v1612, %v1611
    %v1614 = vrot.slane %v1567, 4
    %v1615 = vsel %vm1597, %v1614, %v1613
    %v1616 = vrot.slane %v1568, 3
    %v1617 = vsel %vm1600, %v1616, %v1615
    %v1618 = vrot.slane %v1569, 2
    %v1619 = vsel %vm1603, %v1618, %v1617
    %v1620 = vrot.slane %v1570, 1
    %v1621 = vsel %vm1606, %v1620, %v1619
    %v1624 = vsel %vm1337, %v1607, 0.0
    %v1625 = vrot.slane %v1624, 4
    %v1626 = vadd.f32 %v1624, %v1625
    %v1627 = vrot.slane %v1626, 2
    %v1628 = vadd.f32 %v1626, %v1627
    %v1629 = vrot.slane %v1628, 1
    %v1630 = vadd.f32 %v1628, %v1629
    %v1631 = vsel %vm1337, %v1621, 0.0
    %v1632 = vrot.slane %v1631, 4
    %v1633 = vadd.f32 %v1631, %v1632
    %v1634 = vrot.slane %v1633, 2
    %v1635 = vadd.f32 %v1633, %v1634
    %v1636 = vrot.slane %v1635, 1
    %v1637 = vadd.f32 %v1635, %v1636
    %v1638 = vld [vmem:[%s3] sm:$0xff]
    %v1639 = vld [vmem:[%s3 + $0x8] sm:$0xff]
    %v1640 = vlaneseq
    %v1641 = vshrl.u32 %v1640, 7
    %v1642 = vsub.s32 0, %v1641
    %v1643 = vrot.slane %v1638, %v1642
    %1645 = vbcast.lane.b32.xlu0 %v1643, 256
    %v1646 = vpop.permute.xlu0 %1645
    %v1647 = vlaneseq
    %v1648 = vshrl.u32 %v1647, 7
    %v1649 = vsub.s32 1, %v1648
    %v1650 = vrot.slane %v1638, %v1649
    %1652 = vbcast.lane.b32.xlu0 %v1650, 256
    %v1653 = vpop.permute.xlu0 %1652
    %v1654 = vlaneseq
    %v1655 = vshrl.u32 %v1654, 7
    %v1656 = vsub.s32 2, %v1655
    %v1657 = vrot.slane %v1638, %v1656
    %1659 = vbcast.lane.b32.xlu0 %v1657, 256
    %v1660 = vpop.permute.xlu0 %1659
    %v1661 = vlaneseq
    %v1662 = vshrl.u32 %v1661, 7
    %v1663 = vsub.s32 3, %v1662
    %v1664 = vrot.slane %v1638, %v1663
    %1666 = vbcast.lane.b32.xlu0 %v1664, 256
    %v1667 = vpop.permute.xlu0 %1666
    %v1668 = vlaneseq
    %v1669 = vshrl.u32 %v1668, 7
    %v1670 = vsub.s32 4, %v1669
    %v1671 = vrot.slane %v1638, %v1670
    %1673 = vbcast.lane.b32.xlu0 %v1671, 256
    %v1674 = vpop.permute.xlu0 %1673
    %v1675 = vlaneseq
    %v1676 = vshrl.u32 %v1675, 7
    %v1677 = vsub.s32 5, %v1676
    %v1678 = vrot.slane %v1638, %v1677
    %1680 = vbcast.lane.b32.xlu0 %v1678, 256
    %v1681 = vpop.permute.xlu0 %1680
    %v1682 = vlaneseq
    %v1683 = vshrl.u32 %v1682, 7
    %v1684 = vsub.s32 6, %v1683
    %v1685 = vrot.slane %v1638, %v1684
    %1687 = vbcast.lane.b32.xlu0 %v1685, 256
    %v1688 = vpop.permute.xlu0 %1687
    %v1689 = vlaneseq
    %v1690 = vshrl.u32 %v1689, 7
    %v1691 = vsub.s32 7, %v1690
    %v1692 = vrot.slane %v1638, %v1691
    %1694 = vbcast.lane.b32.xlu0 %v1692, 256
    %v1695 = vpop.permute.xlu0 %1694
    %v1696 = vlaneseq
    %v1697 = vshrl.u32 %v1696, 7
    %v1698 = vsub.s32 0, %v1697
    %v1699 = vrot.slane %v1639, %v1698
    %1701 = vbcast.lane.b32.xlu0 %v1699, 256
    %v1702 = vpop.permute.xlu0 %1701
    %v1703 = vlaneseq
    %v1704 = vshrl.u32 %v1703, 7
    %v1705 = vsub.s32 1, %v1704
    %v1706 = vrot.slane %v1639, %v1705
    %1708 = vbcast.lane.b32.xlu0 %v1706, 256
    %v1709 = vpop.permute.xlu0 %1708
    %v1710 = vlaneseq
    %v1711 = vshrl.u32 %v1710, 7
    %v1712 = vsub.s32 2, %v1711
    %v1713 = vrot.slane %v1639, %v1712
    %1715 = vbcast.lane.b32.xlu0 %v1713, 256
    %v1716 = vpop.permute.xlu0 %1715
    %v1717 = vlaneseq
    %v1718 = vshrl.u32 %v1717, 7
    %v1719 = vsub.s32 3, %v1718
    %v1720 = vrot.slane %v1639, %v1719
    %1722 = vbcast.lane.b32.xlu0 %v1720, 256
    %v1723 = vpop.permute.xlu0 %1722
    %v1724 = vlaneseq
    %v1725 = vshrl.u32 %v1724, 7
    %v1726 = vsub.s32 4, %v1725
    %v1727 = vrot.slane %v1639, %v1726
    %1729 = vbcast.lane.b32.xlu0 %v1727, 256
    %v1730 = vpop.permute.xlu0 %1729
    %v1731 = vlaneseq
    %v1732 = vshrl.u32 %v1731, 7
    %v1733 = vsub.s32 5, %v1732
    %v1734 = vrot.slane %v1639, %v1733
    %1736 = vbcast.lane.b32.xlu0 %v1734, 256
    %v1737 = vpop.permute.xlu0 %1736
    %v1738 = vlaneseq
    %v1739 = vshrl.u32 %v1738, 7
    %v1740 = vsub.s32 6, %v1739
    %v1741 = vrot.slane %v1639, %v1740
    %1743 = vbcast.lane.b32.xlu0 %v1741, 256
    %v1744 = vpop.permute.xlu0 %1743
    %v1745 = vlaneseq
    %v1746 = vshrl.u32 %v1745, 7
    %v1747 = vsub.s32 7, %v1746
    %v1748 = vrot.slane %v1639, %v1747
    %1750 = vbcast.lane.b32.xlu0 %v1748, 256
    %v1751 = vpop.permute.xlu0 %1750
    %v1752 = vmul.f32 %v1191, %v1646
    %v1753 = vmul.f32 %v1192, %v1653
    %v1754 = vmul.f32 %v1193, %v1660
    %v1755 = vmul.f32 %v1194, %v1667
    %v1756 = vmul.f32 %v1195, %v1674
    %v1757 = vmul.f32 %v1196, %v1681
    %v1758 = vmul.f32 %v1197, %v1688
    %v1759 = vmul.f32 %v1198, %v1695
    %v1760 = vmul.f32 %v1199, %v1702
    %v1761 = vmul.f32 %v1200, %v1709
    %v1762 = vmul.f32 %v1201, %v1716
    %v1763 = vmul.f32 %v1202, %v1723
    %v1764 = vmul.f32 %v1203, %v1730
    %v1765 = vmul.f32 %v1204, %v1737
    %v1766 = vmul.f32 %v1205, %v1744
    %v1767 = vmul.f32 %v1206, %v1751
    %v1768 = vsel %vm1337, %v1752, 0.0
    %v1769 = vrot.slane %v1768, 4
    %v1770 = vadd.f32 %v1768, %v1769
    %v1771 = vrot.slane %v1770, 2
    %v1772 = vadd.f32 %v1770, %v1771
    %v1773 = vrot.slane %v1772, 1
    %v1774 = vadd.f32 %v1772, %v1773
    %v1775 = vsel %vm1337, %v1753, 0.0
    %v1776 = vrot.slane %v1775, 4
    %v1777 = vadd.f32 %v1775, %v1776
    %v1778 = vrot.slane %v1777, 2
    %v1779 = vadd.f32 %v1777, %v1778
    %v1780 = vrot.slane %v1779, 1
    %v1781 = vadd.f32 %v1779, %v1780
    %v1782 = vsel %vm1337, %v1754, 0.0
    %v1783 = vrot.slane %v1782, 4
    %v1784 = vadd.f32 %v1782, %v1783
    %v1785 = vrot.slane %v1784, 2
    %v1786 = vadd.f32 %v1784, %v1785
    %v1787 = vrot.slane %v1786, 1
    %v1788 = vadd.f32 %v1786, %v1787
    %v1789 = vsel %vm1337, %v1755, 0.0
    %v1790 = vrot.slane %v1789, 4
    %v1791 = vadd.f32 %v1789, %v1790
    %v1792 = vrot.slane %v1791, 2
    %v1793 = vadd.f32 %v1791, %v1792
    %v1794 = vrot.slane %v1793, 1
    %v1795 = vadd.f32 %v1793, %v1794
    %v1796 = vsel %vm1337, %v1756, 0.0
    %v1797 = vrot.slane %v1796, 4
    %v1798 = vadd.f32 %v1796, %v1797
    %v1799 = vrot.slane %v1798, 2
    %v1800 = vadd.f32 %v1798, %v1799
    %v1801 = vrot.slane %v1800, 1
    %v1802 = vadd.f32 %v1800, %v1801
    %v1803 = vsel %vm1337, %v1757, 0.0
    %v1804 = vrot.slane %v1803, 4
    %v1805 = vadd.f32 %v1803, %v1804
    %v1806 = vrot.slane %v1805, 2
    %v1807 = vadd.f32 %v1805, %v1806
    %v1808 = vrot.slane %v1807, 1
    %v1809 = vadd.f32 %v1807, %v1808
    %v1810 = vsel %vm1337, %v1758, 0.0
    %v1811 = vrot.slane %v1810, 4
    %v1812 = vadd.f32 %v1810, %v1811
    %v1813 = vrot.slane %v1812, 2
    %v1814 = vadd.f32 %v1812, %v1813
    %v1815 = vrot.slane %v1814, 1
    %v1816 = vadd.f32 %v1814, %v1815
    %v1817 = vsel %vm1337, %v1759, 0.0
    %v1818 = vrot.slane %v1817, 4
    %v1819 = vadd.f32 %v1817, %v1818
    %v1820 = vrot.slane %v1819, 2
    %v1821 = vadd.f32 %v1819, %v1820
    %v1822 = vrot.slane %v1821, 1
    %v1823 = vadd.f32 %v1821, %v1822
    %v1824 = vsel %vm1337, %v1760, 0.0
    %v1825 = vrot.slane %v1824, 4
    %v1826 = vadd.f32 %v1824, %v1825
    %v1827 = vrot.slane %v1826, 2
    %v1828 = vadd.f32 %v1826, %v1827
    %v1829 = vrot.slane %v1828, 1
    %v1830 = vadd.f32 %v1828, %v1829
    %v1831 = vsel %vm1337, %v1761, 0.0
    %v1832 = vrot.slane %v1831, 4
    %v1833 = vadd.f32 %v1831, %v1832
    %v1834 = vrot.slane %v1833, 2
    %v1835 = vadd.f32 %v1833, %v1834
    %v1836 = vrot.slane %v1835, 1
    %v1837 = vadd.f32 %v1835, %v1836
    %v1838 = vsel %vm1337, %v1762, 0.0
    %v1839 = vrot.slane %v1838, 4
    %v1840 = vadd.f32 %v1838, %v1839
    %v1841 = vrot.slane %v1840, 2
    %v1842 = vadd.f32 %v1840, %v1841
    %v1843 = vrot.slane %v1842, 1
    %v1844 = vadd.f32 %v1842, %v1843
    %v1845 = vsel %vm1337, %v1763, 0.0
    %v1846 = vrot.slane %v1845, 4
    %v1847 = vadd.f32 %v1845, %v1846
    %v1848 = vrot.slane %v1847, 2
    %v1849 = vadd.f32 %v1847, %v1848
    %v1850 = vrot.slane %v1849, 1
    %v1851 = vadd.f32 %v1849, %v1850
    %v1852 = vsel %vm1337, %v1764, 0.0
    %v1853 = vrot.slane %v1852, 4
    %v1854 = vadd.f32 %v1852, %v1853
    %v1855 = vrot.slane %v1854, 2
    %v1856 = vadd.f32 %v1854, %v1855
    %v1857 = vrot.slane %v1856, 1
    %v1858 = vadd.f32 %v1856, %v1857
    %v1859 = vsel %vm1337, %v1765, 0.0
    %v1860 = vrot.slane %v1859, 4
    %v1861 = vadd.f32 %v1859, %v1860
    %v1862 = vrot.slane %v1861, 2
    %v1863 = vadd.f32 %v1861, %v1862
    %v1864 = vrot.slane %v1863, 1
    %v1865 = vadd.f32 %v1863, %v1864
    %v1866 = vsel %vm1337, %v1766, 0.0
    %v1867 = vrot.slane %v1866, 4
    %v1868 = vadd.f32 %v1866, %v1867
    %v1869 = vrot.slane %v1868, 2
    %v1870 = vadd.f32 %v1868, %v1869
    %v1871 = vrot.slane %v1870, 1
    %v1872 = vadd.f32 %v1870, %v1871
    %v1873 = vsel %vm1337, %v1767, 0.0
    %v1874 = vrot.slane %v1873, 4
    %v1875 = vadd.f32 %v1873, %v1874
    %v1876 = vrot.slane %v1875, 2
    %v1877 = vadd.f32 %v1875, %v1876
    %v1878 = vrot.slane %v1877, 1
    %v1879 = vadd.f32 %v1877, %v1878
    %v1880 = vsel %vm1450, %v1638, 0.0
    %1881 = vadd.xlane.f32.xlu0 %v1880
    %v1882 = vpop.xlane.xlu0 %1881
    %v1883 = vsel %vm1450, %v1639, 0.0
    %1884 = vadd.xlane.f32.xlu0 %v1883
    %v1885 = vpop.xlane.xlu0 %1884
    %v1886 = vadd.f32 %v1882, 0.001
    %v1887 = vadd.f32 %v1885, 0.001
    %v1888 = vrcp.pop %v1886
    %v1889 = vrcp.pop %v1887
    %v1890 = vmul.f32 %v1886, %v1888
    %v1891 = vmul.f32 %v1887, %v1889
    %v1892 = vsub.f32 2.0, %v1890
    %v1893 = vsub.f32 2.0, %v1891
    %v1894 = vmul.f32 %v1888, %v1892
    %v1895 = vmul.f32 %v1889, %v1893
    %v1898 = vrot.slane %v1894, 1
    %v1899 = vrot.slane %v1894, 2
    %v1900 = vrot.slane %v1894, 3
    %v1901 = vrot.slane %v1894, 4
    %v1902 = vrot.slane %v1894, 5
    %v1903 = vrot.slane %v1894, 6
    %v1904 = vrot.slane %v1894, 7
    %v1905 = vrot.slane %v1895, 1
    %v1906 = vrot.slane %v1895, 2
    %v1907 = vrot.slane %v1895, 3
    %v1908 = vrot.slane %v1895, 4
    %v1909 = vrot.slane %v1895, 5
    %v1910 = vrot.slane %v1895, 6
    %v1911 = vrot.slane %v1895, 7
    %v1928 = vmul.f32 %v1774, %v1894
    %v1929 = vmul.f32 %v1781, %v1898
    %v1930 = vmul.f32 %v1788, %v1899
    %v1931 = vmul.f32 %v1795, %v1900
    %v1932 = vmul.f32 %v1802, %v1901
    %v1933 = vmul.f32 %v1809, %v1902
    %v1934 = vmul.f32 %v1816, %v1903
    %v1935 = vmul.f32 %v1823, %v1904
    %v1936 = vmul.f32 %v1830, %v1895
    %v1937 = vmul.f32 %v1837, %v1905
    %v1938 = vmul.f32 %v1844, %v1906
    %v1939 = vmul.f32 %v1851, %v1907
    %v1940 = vmul.f32 %v1858, %v1908
    %v1941 = vmul.f32 %v1865, %v1909
    %v1942 = vmul.f32 %v1872, %v1910
    %v1943 = vmul.f32 %v1879, %v1911
    %v1944 = vld [vmem:[%s5] sm:$0xff]
    %v1945 = vld [vmem:[%s5 + $0x8] sm:$0xff]
    %1947 = vset.pattern.permute.xlu0 0
    %1948 = vperm.xlu0 %1947, %v1944
    %v1949 = vpop.permute.xlu0 %1948
    %1951 = vset.pattern.permute.xlu0 0
    %1952 = vperm.xlu0 %1951, %v1945
    %v1953 = vpop.permute.xlu0 %1952
    %v1954 = vrot.slane %v1949, 1
    %v1955 = vrot.slane %v1949, 2
    %v1956 = vrot.slane %v1949, 3
    %v1957 = vrot.slane %v1949, 4
    %v1958 = vrot.slane %v1949, 5
    %v1959 = vrot.slane %v1949, 6
    %v1960 = vrot.slane %v1949, 7
    %v1961 = vrot.slane %v1953, 1
    %v1962 = vrot.slane %v1953, 2
    %v1963 = vrot.slane %v1953, 3
    %v1964 = vrot.slane %v1953, 4
    %v1965 = vrot.slane %v1953, 5
    %v1966 = vrot.slane %v1953, 6
    %v1967 = vrot.slane %v1953, 7
    %v1984 = vmul.f32 %v1928, %v1949
    %v1985 = vmul.f32 %v1929, %v1954
    %v1986 = vmul.f32 %v1930, %v1955
    %v1987 = vmul.f32 %v1931, %v1956
    %v1988 = vmul.f32 %v1932, %v1957
    %v1989 = vmul.f32 %v1933, %v1958
    %v1990 = vmul.f32 %v1934, %v1959
    %v1991 = vmul.f32 %v1935, %v1960
    %v1992 = vmul.f32 %v1936, %v1953
    %v1993 = vmul.f32 %v1937, %v1961
    %v1994 = vmul.f32 %v1938, %v1962
    %v1995 = vmul.f32 %v1939, %v1963
    %v1996 = vmul.f32 %v1940, %v1964
    %v1997 = vmul.f32 %v1941, %v1965
    %v1998 = vmul.f32 %v1942, %v1966
    %v1999 = vmul.f32 %v1943, %v1967
    %v2016 = vrot.slane %v1985, 7
    %v2017 = vsel %vm1588, %v2016, %v1984
    %v2018 = vrot.slane %v1986, 6
    %v2019 = vsel %vm1591, %v2018, %v2017
    %v2020 = vrot.slane %v1987, 5
    %v2021 = vsel %vm1594, %v2020, %v2019
    %v2022 = vrot.slane %v1988, 4
    %v2023 = vsel %vm1597, %v2022, %v2021
    %v2024 = vrot.slane %v1989, 3
    %v2025 = vsel %vm1600, %v2024, %v2023
    %v2026 = vrot.slane %v1990, 2
    %v2027 = vsel %vm1603, %v2026, %v2025
    %v2028 = vrot.slane %v1991, 1
    %v2029 = vsel %vm1606, %v2028, %v2027
    %v2030 = vrot.slane %v1993, 7
    %v2031 = vsel %vm1588, %v2030, %v1992
    %v2032 = vrot.slane %v1994, 6
    %v2033 = vsel %vm1591, %v2032, %v2031
    %v2034 = vrot.slane %v1995, 5
    %v2035 = vsel %vm1594, %v2034, %v2033
    %v2036 = vrot.slane %v1996, 4
    %v2037 = vsel %vm1597, %v2036, %v2035
    %v2038 = vrot.slane %v1997, 3
    %v2039 = vsel %vm1600, %v2038, %v2037
    %v2040 = vrot.slane %v1998, 2
    %v2041 = vsel %vm1603, %v2040, %v2039
    %v2042 = vrot.slane %v1999, 1
    %v2043 = vsel %vm1606, %v2042, %v2041
    %v2046 = vsel %vm1337, %v2029, 0.0
    %v2047 = vrot.slane %v2046, 4
    %v2048 = vadd.f32 %v2046, %v2047
    %v2049 = vrot.slane %v2048, 2
    %v2050 = vadd.f32 %v2048, %v2049
    %v2051 = vrot.slane %v2050, 1
    %v2052 = vadd.f32 %v2050, %v2051
    %v2053 = vsel %vm1337, %v2043, 0.0
    %v2054 = vrot.slane %v2053, 4
    %v2055 = vadd.f32 %v2053, %v2054
    %v2056 = vrot.slane %v2055, 2
    %v2057 = vadd.f32 %v2055, %v2056
    %v2058 = vrot.slane %v2057, 1
    %v2059 = vadd.f32 %v2057, %v2058
    %v2060 = vld [vmem:[%s12] sm:$0xf]
    %v2061 = vld [vmem:[%s13] sm:$0xf]
    %v2064 = vrot.slane %v2059, 7
    %v2065 = vsel %vm1588, %v2064, %v2052
    %v2066 = vsel %vm1337, %v2065, 0
    %v2069 = vsel %vm217, %v2061, 0
    %2071 = vmatprep.subr.mxu0 0.0
    %2072 = vmatpush1.msra.mxu0 %v2069
    %2073 = vmatprep.subr.mxu0 0.0
    %2074 = vmatpush1.msra.mxu0 0.0
    %2075 = vmatprep.subr.mxu0 0.0
    %2076 = vmatpush1.msra.mxu0 0.0
    %2077 = vmatprep.subr.mxu0 0.0
    %2078 = vmatpush1.msra.mxu0 0.0
    %2079 = vmatprep.subr.mxu0 0.0
    %2080 = vmatpush1.msra.mxu0 0.0
    %2081 = vmatprep.subr.mxu0 0.0
    %2082 = vmatpush1.msra.mxu0 0.0
    %2083 = vmatprep.subr.mxu0 0.0
    %2084 = vmatpush1.msra.mxu0 0.0
    %2085 = vmatprep.subr.mxu0 0.0
    %2086 = vmatpush1.msra.mxu0 0.0
    %2087 = vmatprep.subr.mxu0 0.0
    %2088 = vmatpush1.msra.mxu0 0.0
    %2089 = vmatprep.subr.mxu0 0.0
    %2090 = vmatpush1.msra.mxu0 0.0
    %2091 = vmatprep.subr.mxu0 0.0
    %2092 = vmatpush1.msra.mxu0 0.0
    %2093 = vmatprep.subr.mxu0 0.0
    %2094 = vmatpush1.msra.mxu0 0.0
    %2095 = vmatprep.subr.mxu0 0.0
    %2096 = vmatpush1.msra.mxu0 0.0
    %2097 = vmatprep.subr.mxu0 0.0
    %2098 = vmatpush1.msra.mxu0 0.0
    %2099 = vmatprep.subr.mxu0 0.0
    %2100 = vmatpush1.msra.mxu0 0.0
    %2101 = vmatprep.subr.mxu0 0.0
    %2102 = vmatpush1.msra.mxu0 0.0
    %2103 = vmatprep.subr.mxu0 0.0
    %2104 = vmatpush1.msra.mxu0 0.0
    %2105 = vmatprep.subr.mxu0 0.0
    %2106 = vmatpush1.msra.mxu0 0.0
    %2107 = vmatprep.subr.mxu0 0.0
    %2108 = vmatpush1.msra.mxu0 0.0
    %2109 = vmatprep.subr.mxu0 0.0
    %2110 = vmatpush1.msra.mxu0 0.0
    %2111 = vmatprep.subr.mxu0 0.0
    %2112 = vmatpush1.msra.mxu0 0.0
    %2113 = vmatprep.subr.mxu0 0.0
    %2114 = vmatpush1.msra.mxu0 0.0
    %2115 = vmatprep.subr.mxu0 0.0
    %2116 = vmatpush1.msra.mxu0 0.0
    %2117 = vmatprep.subr.mxu0 0.0
    %2118 = vmatpush1.msra.mxu0 0.0
    %2119 = vmatprep.subr.mxu0 0.0
    %2120 = vmatpush1.msra.mxu0 0.0
    %2121 = vmatprep.subr.mxu0 0.0
    %2122 = vmatpush1.msra.mxu0 0.0
    %2123 = vmatprep.subr.mxu0 0.0
    %2124 = vmatpush1.msra.mxu0 0.0
    %2125 = vmatprep.subr.mxu0 0.0
    %2126 = vmatpush1.msra.mxu0 0.0
    %2127 = vmatprep.subr.mxu0 0.0
    %2128 = vmatpush1.msra.mxu0 0.0
    %2129 = vmatprep.subr.mxu0 0.0
    %2130 = vmatpush1.msra.mxu0 0.0
    %2131 = vmatprep.subr.mxu0 0.0
    %2132 = vmatpush1.msra.mxu0 0.0
    %2133 = vmatprep.subr.mxu0 0.0
    %2134 = vmatpush1.msra.mxu0 0.0
    %2135 = vmatprep.mubr.f32.mxu0 0.0
    %2136 = vmatmul.mubr.f32.gmra.mrb[0].mxu0 %v2066
    %v2137 = vpop.f32.mrb[0].mxu0
    %v2138 = vadd.f32 0.0, %v2137
    %v2139 = vpop.f32.mrb[0].mxu0
    %2140 = vdwg.mxu0
    %v2143 = vrot.slane %v1637, 7
    %v2144 = vsel %vm1588, %v2143, %v1630
    %v2145 = vsel %vm1337, %v2144, 0
    %v2148 = vsel %vm217, %v2060, 0
    %2150 = vmatprep.subr.mxu0 0.0
    %2151 = vmatpush1.msra.mxu0 %v2148
    %2152 = vmatprep.subr.mxu0 0.0
    %2153 = vmatpush1.msra.mxu0 0.0
    %2154 = vmatprep.subr.mxu0 0.0
    %2155 = vmatpush1.msra.mxu0 0.0
    %2156 = vmatprep.subr.mxu0 0.0
    %2157 = vmatpush1.msra.mxu0 0.0
    %2158 = vmatprep.subr.mxu0 0.0
    %2159 = vmatpush1.msra.mxu0 0.0
    %2160 = vmatprep.subr.mxu0 0.0
    %2161 = vmatpush1.msra.mxu0 0.0
    %2162 = vmatprep.subr.mxu0 0.0
    %2163 = vmatpush1.msra.mxu0 0.0
    %2164 = vmatprep.subr.mxu0 0.0
    %2165 = vmatpush1.msra.mxu0 0.0
    %2166 = vmatprep.subr.mxu0 0.0
    %2167 = vmatpush1.msra.mxu0 0.0
    %2168 = vmatprep.subr.mxu0 0.0
    %2169 = vmatpush1.msra.mxu0 0.0
    %2170 = vmatprep.subr.mxu0 0.0
    %2171 = vmatpush1.msra.mxu0 0.0
    %2172 = vmatprep.subr.mxu0 0.0
    %2173 = vmatpush1.msra.mxu0 0.0
    %2174 = vmatprep.subr.mxu0 0.0
    %2175 = vmatpush1.msra.mxu0 0.0
    %2176 = vmatprep.subr.mxu0 0.0
    %2177 = vmatpush1.msra.mxu0 0.0
    %2178 = vmatprep.subr.mxu0 0.0
    %2179 = vmatpush1.msra.mxu0 0.0
    %2180 = vmatprep.subr.mxu0 0.0
    %2181 = vmatpush1.msra.mxu0 0.0
    %2182 = vmatprep.subr.mxu0 0.0
    %2183 = vmatpush1.msra.mxu0 0.0
    %2184 = vmatprep.subr.mxu0 0.0
    %2185 = vmatpush1.msra.mxu0 0.0
    %2186 = vmatprep.subr.mxu0 0.0
    %2187 = vmatpush1.msra.mxu0 0.0
    %2188 = vmatprep.subr.mxu0 0.0
    %2189 = vmatpush1.msra.mxu0 0.0
    %2190 = vmatprep.subr.mxu0 0.0
    %2191 = vmatpush1.msra.mxu0 0.0
    %2192 = vmatprep.subr.mxu0 0.0
    %2193 = vmatpush1.msra.mxu0 0.0
    %2194 = vmatprep.subr.mxu0 0.0
    %2195 = vmatpush1.msra.mxu0 0.0
    %2196 = vmatprep.subr.mxu0 0.0
    %2197 = vmatpush1.msra.mxu0 0.0
    %2198 = vmatprep.subr.mxu0 0.0
    %2199 = vmatpush1.msra.mxu0 0.0
    %2200 = vmatprep.subr.mxu0 0.0
    %2201 = vmatpush1.msra.mxu0 0.0
    %2202 = vmatprep.subr.mxu0 0.0
    %2203 = vmatpush1.msra.mxu0 0.0
    %2204 = vmatprep.subr.mxu0 0.0
    %2205 = vmatpush1.msra.mxu0 0.0
    %2206 = vmatprep.subr.mxu0 0.0
    %2207 = vmatpush1.msra.mxu0 0.0
    %2208 = vmatprep.subr.mxu0 0.0
    %2209 = vmatpush1.msra.mxu0 0.0
    %2210 = vmatprep.subr.mxu0 0.0
    %2211 = vmatpush1.msra.mxu0 0.0
    %2212 = vmatprep.subr.mxu0 0.0
    %2213 = vmatpush1.msra.mxu0 0.0
    %2214 = vmatprep.mubr.f32.mxu0 0.0
    %2215 = vmatmul.mubr.f32.gmra.mrb[0].mxu0 %v2145
    %v2216 = vpop.f32.mrb[0].mxu0
    %v2217 = vadd.f32 %v2138, %v2216
    %v2218 = vpop.f32.mrb[0].mxu0
    %2219 = vdwg.mxu0
    %v2220 = vld [vmem:[%s14] sm:$0x1]
    %v2222 = vlaneseq
    %v2223 = vshrl.u32 %v2222, 7
    %v2224 = vsub.s32 0, %v2223
    %v2225 = vrot.slane %v2220, %v2224
    %v2227 = vadd.f32 %v2217, %v2225
    %v2228 = vmax.f32 %v2227, 0.0
    %v2229 = vld [vmem:[%s15] sm:$0xff]
    %v2230 = vld [vmem:[%s15 + $0x8] sm:$0xff]
    %v2231 = vld [vmem:[#allocation2] sm:$0x1]
    %v2233 = vlaneseq
    %v2234 = vshrl.u32 %v2233, 7
    %v2235 = vsub.s32 0, %v2234
    %v2236 = vrot.slane %v2231, %v2235
    %v2239 = vsel %vm487, %v2228, 0
    %2241 = vmatprep.subr.mxu0 0.0
    %2242 = vmatpush1.msra.mxu0 %v2229
    %2243 = vmatprep.subr.mxu0 0.0
    %2244 = vmatpush1.msra.mxu0 %v2230
    %2245 = vmatprep.subr.mxu0 0.0
    %2246 = vmatpush1.msra.mxu0 0.0
    %2247 = vmatprep.subr.mxu0 0.0
    %2248 = vmatpush1.msra.mxu0 0.0
    %2249 = vmatprep.subr.mxu0 0.0
    %2250 = vmatpush1.msra.mxu0 0.0
    %2251 = vmatprep.subr.mxu0 0.0
    %2252 = vmatpush1.msra.mxu0 0.0
    %2253 = vmatprep.subr.mxu0 0.0
    %2254 = vmatpush1.msra.mxu0 0.0
    %2255 = vmatprep.subr.mxu0 0.0
    %2256 = vmatpush1.msra.mxu0 0.0
    %2257 = vmatprep.subr.mxu0 0.0
    %2258 = vmatpush1.msra.mxu0 0.0
    %2259 = vmatprep.subr.mxu0 0.0
    %2260 = vmatpush1.msra.mxu0 0.0
    %2261 = vmatprep.subr.mxu0 0.0
    %2262 = vmatpush1.msra.mxu0 0.0
    %2263 = vmatprep.subr.mxu0 0.0
    %2264 = vmatpush1.msra.mxu0 0.0
    %2265 = vmatprep.subr.mxu0 0.0
    %2266 = vmatpush1.msra.mxu0 0.0
    %2267 = vmatprep.subr.mxu0 0.0
    %2268 = vmatpush1.msra.mxu0 0.0
    %2269 = vmatprep.subr.mxu0 0.0
    %2270 = vmatpush1.msra.mxu0 0.0
    %2271 = vmatprep.subr.mxu0 0.0
    %2272 = vmatpush1.msra.mxu0 0.0
    %2273 = vmatprep.subr.mxu0 0.0
    %2274 = vmatpush1.msra.mxu0 0.0
    %2275 = vmatprep.subr.mxu0 0.0
    %2276 = vmatpush1.msra.mxu0 0.0
    %2277 = vmatprep.subr.mxu0 0.0
    %2278 = vmatpush1.msra.mxu0 0.0
    %2279 = vmatprep.subr.mxu0 0.0
    %2280 = vmatpush1.msra.mxu0 0.0
    %2281 = vmatprep.subr.mxu0 0.0
    %2282 = vmatpush1.msra.mxu0 0.0
    %2283 = vmatprep.subr.mxu0 0.0
    %2284 = vmatpush1.msra.mxu0 0.0
    %2285 = vmatprep.subr.mxu0 0.0
    %2286 = vmatpush1.msra.mxu0 0.0
    %2287 = vmatprep.subr.mxu0 0.0
    %2288 = vmatpush1.msra.mxu0 0.0
    %2289 = vmatprep.subr.mxu0 0.0
    %2290 = vmatpush1.msra.mxu0 0.0
    %2291 = vmatprep.subr.mxu0 0.0
    %2292 = vmatpush1.msra.mxu0 0.0
    %2293 = vmatprep.subr.mxu0 0.0
    %2294 = vmatpush1.msra.mxu0 0.0
    %2295 = vmatprep.subr.mxu0 0.0
    %2296 = vmatpush1.msra.mxu0 0.0
    %2297 = vmatprep.subr.mxu0 0.0
    %2298 = vmatpush1.msra.mxu0 0.0
    %2299 = vmatprep.subr.mxu0 0.0
    %2300 = vmatpush1.msra.mxu0 0.0
    %2301 = vmatprep.subr.mxu0 0.0
    %2302 = vmatpush1.msra.mxu0 0.0
    %2303 = vmatprep.subr.mxu0 0.0
    %2304 = vmatpush1.msra.mxu0 0.0
    %2305 = vmatprep.mubr.f32.mxu0 0.0
    %2306 = vmatmul.mubr.f32.gmra.mrb[0].mxu0 %v2239
    %v2307 = vpop.f32.mrb[0].mxu0
    %v2308 = vadd.f32 %v2236, %v2307
    %v2309 = vpop.f32.mrb[0].mxu0
    %2310 = vdwg.mxu0
    %v2311 = vld [vmem:[#allocation3] sm:$0x1]
    %v2313 = vlaneseq
    %v2314 = vshrl.u32 %v2313, 7
    %v2315 = vsub.s32 0, %v2314
    %v2316 = vrot.slane %v2311, %v2315
    %v2318 = vadd.f32 %v2308, %v2316
    %2319 = vxpose.xlu0.b32.start [1/16] %v2318, 128
    %2320 = vxpose.xlu0.b32.cont [2/16] 0.0, 128
    %2321 = vxpose.xlu0.b32.cont [3/16] 0.0, 128
    %2322 = vxpose.xlu0.b32.cont [4/16] 0.0, 128
    %2323 = vxpose.xlu0.b32.cont [5/16] 0.0, 128
    %2324 = vxpose.xlu0.b32.cont [6/16] 0.0, 128
    %2325 = vxpose.xlu0.b32.cont [7/16] 0.0, 128
    %2326 = vxpose.xlu0.b32.cont [8/16] 0.0, 128
    %2327 = vxpose.xlu0.b32.cont [9/16] 0.0, 128
    %2328 = vxpose.xlu0.b32.cont [10/16] 0.0, 128
    %2329 = vxpose.xlu0.b32.cont [11/16] 0.0, 128
    %2330 = vxpose.xlu0.b32.cont [12/16] 0.0, 128
    %2331 = vxpose.xlu0.b32.cont [13/16] 0.0, 128
    %2332 = vxpose.xlu0.b32.cont [14/16] 0.0, 128
    %2333 = vxpose.xlu0.b32.cont [15/16] 0.0, 128
    %2334 = vxpose.xlu0.b32.end [16/16] 0.0, 128
    %v2335 = vpop.trf.xlu0
    %v2336 = vpop.trf.xlu0
    %v2337 = vpop.trf.xlu0
    %v2338 = vpop.trf.xlu0
    %v2339 = vpop.trf.xlu0
    %v2340 = vpop.trf.xlu0
    %v2341 = vpop.trf.xlu0
    %v2342 = vpop.trf.xlu0
    %v2343 = vpop.trf.xlu0
    %v2344 = vpop.trf.xlu0
    %v2345 = vpop.trf.xlu0
    %v2346 = vpop.trf.xlu0
    %v2347 = vpop.trf.xlu0
    %v2348 = vpop.trf.xlu0
    %v2349 = vpop.trf.xlu0
    %v2350 = vpop.trf.xlu0
    %vm2351 = vcmask 8192
    %2352 = vst.msk [vmem:[#allocation7] sm:$0x1] %vm2351, %v2335
    // Predicated region
    $region78: #{game_rating_forward.1} parent=1 // pred_check
      _
    $region79: #{game_rating_forward.1} parent=1 // pred_check_branch
      %2354 = sbr.rel (0) target = $region81
    $region80: #{game_rating_forward.1} parent=1 // pred_region
      %s2356 = ssub.s32 16, 16
      %2357 = vsyncadd [#allocation6], %s2356
      %s2359 = sshll.u32 [#allocation7], 4
      %s2360 = int_to_ptr.vmem [resolvable:$true] %s2359
      %2362 = dma.vmem_to_hbm [thread:$0]  %s2360, 16, %s18, [#allocation6]
    $region81: #{game_rating_forward.1} parent=1 // pred_fallthru
      _
    // Predicated region
    $region82: #{game_rating_forward.1} parent=1 // pred_check
      _
    $region83: #{game_rating_forward.1} parent=1 // pred_check_branch
      %2364 = sbr.rel (0) target = $region85
    $region84: #{game_rating_forward.1} parent=1 // pred_region
      %2365 = dma.done [#allocation6], 16
    $region85: #{game_rating_forward.1} parent=1 // pred_fallthru
      _
    %2366 = vsyncpa [#allocation5], 1
    %2367 = vsyncpa [#allocation6], 1

</llo_original>
